<compile_context>
chip_gen: v7x
topology: tpu7x:2x2x1
jax: 0.10.0
libtpu: 0.0.40
codegen_flags: <defaults>
</compile_context>

<pallas_src>
import functools

import jax
import jax.numpy as jnp
from jax.experimental import pallas as pl
from jax.experimental.pallas import tpu as pltpu


LANE = 128                    # lane width / minimum tile alignment
TM_MAX = 1024                 # max output-row tile (adj rows)
TK_MAX = 512                  # max reduction tile over nodes (adj cols)
TN_MAX = 1024                 # single-j-tile threshold for F_out
VMEM_LIMIT = 32 * 1024 * 1024 # scoped VMEM: bumps v5e's 16 MiB default, safe on v6e/v7x


def _round_up(x, m):
    return -(-x // m) * m


def _cdiv(a, b):
    return -(-a // b)


def _plan_node_tiles(n):
    """Pick (tm, n_pad_m, tk, n_pad_k) for the node dimension of adj."""
    # Output rows (grid axis i): as large as possible up to TM_MAX, but sized
    # from n so padding waste stays small; give v7x's second TensorCore a
    # second i-tile once the graph is big enough for the split to be ~free.
    gi = max(1, _cdiv(n, TM_MAX))
    if gi == 1 and n >= 512:
        gi = 2
    tm = _round_up(_cdiv(n, gi), LANE)
    n_pad_m = gi * tm

    # Reduction over nodes (grid axis k, innermost): 256-deep tiles for the
    # v6e/v7x MXU when the graph is large; 128-aligned for small graphs to
    # keep the quadratic adj padding down (review item: TK=128 for small N).
    k_align = 256 if n >= 2048 else LANE
    gk = max(1, _cdiv(n, TK_MAX))
    tk = _round_up(_cdiv(n, gk), k_align)
    n_pad_k = gk * tk
    return tm, n_pad_m, tk, n_pad_k


def _plan_feature_tiles(f_out):
    """Pick (tn, f_out_pad). Single j tile whenever F_out is modest, so adj is
    read from HBM exactly once."""
    f_out_pad = _round_up(f_out, LANE)
    if f_out_pad <= TN_MAX:
        return f_out_pad, f_out_pad
    tn = 512
    return tn, _round_up(f_out, tn)


def prepare_adjacency(adj, *, compute_dtype=jnp.bfloat16):
    """Pad + cast adj once (reusable across GCN layers / epochs).

    graph_convolution() also accepts the raw (N, N) matrix and will do this
    itself, at the cost of an extra full HBM pass per call.
    """
    n = adj.shape[0]
    _, n_pad_m, _, n_pad_k = _plan_node_tiles(n)
    return jnp.pad(adj, ((0, n_pad_m - n), (0, n_pad_k - n))).astype(compute_dtype)


def support_kernel(x_ref, w_ref, s_ref):
    # support tile = x[row-tile] @ W[:, col-tile]; f32 on the MXU, a single
    # rounding to the compute dtype at the store.
    s_ref[...] = jnp.dot(
        x_ref[...], w_ref[...], preferred_element_type=jnp.float32
    ).astype(s_ref.dtype)


def aggregate_kernel(adj_ref, s_ref, b_ref, out_ref):
    # out[i-tile, j-tile] = sum_k adj[i-tile, k-tile] @ support[k-tile, j-tile] + b
    # The f32 output block is resident across k (index_map ignores k), so we
    # accumulate directly into it: no VMEM scratch, no epilogue copy.
    k = pl.program_id(2)

    @pl.when(k == 0)
    def _init():
        out_ref[...] = jnp.zeros_like(out_ref)

    out_ref[...] += jnp.dot(adj_ref[...], s_ref[...],
                            preferred_element_type=jnp.float32)

    @pl.when(k == pl.num_programs(2) - 1)
    def _bias():
        out_ref[...] += b_ref[...]


@functools.partial(jax.jit, static_argnames=("compute_dtype",))
def graph_convolution(x, adj, weight, bias, *, compute_dtype=jnp.bfloat16):
    """Pallas implementation of GraphConvolution.forward.

    x:      (N, F_in)               float32
    adj:    (N, N) raw float32, or the padded/cast output of prepare_adjacency
    weight: (F_in, F_out)           float32
    bias:   (F_out,)                float32
    returns (N, F_out)              float32
    """
    n, f_in = x.shape
    f_out = weight.shape[1]

    tm, n_pad_m, tk, n_pad_k = _plan_node_tiles(n)
    tn, f_out_pad = _plan_feature_tiles(f_out)
    f_in_pad = _round_up(f_in, LANE)

    # Adjacency: reuse a pre-prepared (padded, compute_dtype) matrix if given;
    # otherwise pad + cast here (zero padding is exact for this computation).
    if adj.shape == (n_pad_m, n_pad_k):
        adj_p = adj.astype(compute_dtype)
    else:
        adj_p = jnp.pad(adj, ((0, n_pad_m - n), (0, n_pad_k - n))).astype(compute_dtype)

    x_p = jnp.pad(x, ((0, n_pad_k - n), (0, f_in_pad - f_in))).astype(compute_dtype)
    w_p = jnp.pad(weight,
                  ((0, f_in_pad - f_in), (0, f_out_pad - f_out))).astype(compute_dtype)
    b_p = jnp.pad(bias, (0, f_out_pad - f_out)).reshape(1, f_out_pad).astype(jnp.float32)

    # --- Kernel 1: support = x @ W  (tiny; hoisted out of the reduction) ----
    support_p = pl.pallas_call(
        support_kernel,
        out_shape=jax.ShapeDtypeStruct((n_pad_k, f_out_pad), compute_dtype),
        grid_spec=pltpu.PrefetchScalarGridSpec(
            num_scalar_prefetch=0,
            grid=(n_pad_k // tk, f_out_pad // tn),
            in_specs=[
                pl.BlockSpec((tk, f_in_pad), lambda r, j: (r, 0)),   # x rows
                pl.BlockSpec((f_in_pad, tn), lambda r, j: (0, j)),   # W cols
            ],
            out_specs=pl.BlockSpec((tk, tn), lambda r, j: (r, j)),
        ),
        compiler_params=pltpu.CompilerParams(
            dimension_semantics=("parallel", "parallel"),
            vmem_limit_bytes=VMEM_LIMIT,
        ),
    )(x_p, w_p)

    # --- Kernel 2: out = adj @ support + bias  (dominant O(N^2 * F_out)) ----
    grid = (n_pad_m // tm, f_out_pad // tn, n_pad_k // tk)
    out_p = pl.pallas_call(
        aggregate_kernel,
        out_shape=jax.ShapeDtypeStruct((n_pad_m, f_out_pad), jnp.float32),
        grid_spec=pltpu.PrefetchScalarGridSpec(
            num_scalar_prefetch=0,
            grid=grid,
            in_specs=[
                pl.BlockSpec((tm, tk), lambda i, j, k: (i, k)),      # adj
                pl.BlockSpec((tk, tn), lambda i, j, k: (k, j)),      # support
                pl.BlockSpec((1, tn), lambda i, j, k: (0, j)),       # bias
            ],
            out_specs=pl.BlockSpec((tm, tn), lambda i, j, k: (i, j)),
        ),
        compiler_params=pltpu.CompilerParams(
            dimension_semantics=("parallel", "parallel", "arbitrary"),
            vmem_limit_bytes=VMEM_LIMIT,
        ),
    )(adj_p, support_p, b_p)

    return out_p[:n, :f_out]


if __name__ == "__main__":
    # Small but non-trivial: exercises row/col/F padding and both the
    # prepared-adjacency fast path and the raw-adjacency path.
    N, F_IN_DIM, F_OUT_DIM = 300, 48, 40

    key = jax.random.PRNGKey(0)
    kx, kadj, kw, kb = jax.random.split(key, 4)

    x = jax.random.normal(kx, (N, F_IN_DIM), dtype=jnp.float32)

    # Symmetric, row-normalized adjacency with self loops (normalized in f32).
    a = jax.random.uniform(kadj, (N, N), dtype=jnp.float32)
    adj = ((a + a.T) * 0.5 > 0.7).astype(jnp.float32) + jnp.eye(N, dtype=jnp.float32)
    adj = adj / jnp.sum(adj, axis=1, keepdims=True)

    # Parameters: Xavier-uniform weight (as in the nn.Module init); a small
    # nonzero bias so the bias-broadcast path is actually verified.
    bound = (6.0 / (F_IN_DIM + F_OUT_DIM)) ** 0.5
    weight = jax.random.uniform(
        kw, (F_IN_DIM, F_OUT_DIM), dtype=jnp.float32, minval=-bound, maxval=bound
    )
    bias = 0.1 * jax.random.normal(kb, (F_OUT_DIM,), dtype=jnp.float32)

    # Reference in plain JAX (same math as the PyTorch forward).
    ref = adj @ (x @ weight) + bias

    # bf16 fast path with a pre-prepared adjacency (the intended steady-state
    # usage: pad+cast adj once, reuse across layers/epochs).
    adj_bf16 = jax.block_until_ready(prepare_adjacency(adj))
    out_bf16 = jax.block_until_ready(graph_convolution(x, adj_bf16, weight, bias))
    assert out_bf16.shape == (N, F_OUT_DIM)
    assert jnp.allclose(out_bf16, ref, atol=5e-2, rtol=5e-2), float(
        jnp.max(jnp.abs(out_bf16 - ref))
    )

    # f32 path from the raw adjacency: tight check of tiling / accumulation /
    # bias / padding logic.
    out_f32 = jax.block_until_ready(
        graph_convolution(x, adj, weight, bias, compute_dtype=jnp.float32)
    )
    assert out_f32.shape == (N, F_OUT_DIM)
    assert jnp.allclose(out_f32, ref, atol=1e-3, rtol=1e-3), float(
        jnp.max(jnp.abs(out_f32 - ref))
    )

    print("KERNEL_OK")
</pallas_src>

<mosaic_0001>
module attributes {stable_mosaic.version = 11 : i64} {
  func.func @support_kernel(%arg0: i32, %arg1: i32, %arg2: memref<384x128xbf16, #tpu.memory_space<vmem>>, %arg3: memref<128x128xbf16, #tpu.memory_space<vmem>>, %arg4: memref<384x128xbf16, #tpu.memory_space<vmem>>) attributes {dimension_semantics = [#tpu.dimension_semantics<parallel>, #tpu.dimension_semantics<parallel>], iteration_bounds = array<i64: 1, 1>, scalar_prefetch = 0 : i64, scratch_operands = 0 : i64, tpu.core_type = #tpu.core_type<tc>, window_params = [{transform_indices = @transform_0, window_bounds = array<i64: 384, 128>}, {transform_indices = @transform_1, window_bounds = array<i64: 128, 128>}, {transform_indices = @transform_2, window_bounds = array<i64: 384, 128>}]} {
    %c0 = arith.constant 0 : index
    %c0_0 = arith.constant 0 : index
    %0 = vector.load %arg2[%c0, %c0_0] : memref<384x128xbf16, #tpu.memory_space<vmem>>, vector<384x128xbf16>
    %c0_1 = arith.constant 0 : index
    %c0_2 = arith.constant 0 : index
    %1 = vector.load %arg3[%c0_1, %c0_2] : memref<128x128xbf16, #tpu.memory_space<vmem>>, vector<128x128xbf16>
    %cst = arith.constant dense<0.000000e+00> : vector<384x128xf32>
    %2 = tpu.matmul %0, %1, %cst {dimension_numbers = #tpu.dot_dimension_numbers<[1], [0], [0], [1], [0, 0, 1, 1], [], []>} : vector<384x128xbf16>, vector<128x128xbf16>, vector<384x128xf32> -> vector<384x128xf32>
    %3 = arith.truncf %2 : vector<384x128xf32> to vector<384x128xbf16>
    %c0_3 = arith.constant 0 : index
    %c0_4 = arith.constant 0 : index
    %4 = vector.load %arg4[%c0_3, %c0_4] : memref<384x128xbf16, #tpu.memory_space<vmem>>, vector<384x128xbf16>
    tpu.vector_store %arg4[%c0_3, %c0_4], %3 {strides = array<i32>} : memref<384x128xbf16, #tpu.memory_space<vmem>>, vector<384x128xbf16>,
    return
  }
  func.func @transform_0(%arg0: i32, %arg1: i32) -> (i32, i32) {
    %c0_i32 = arith.constant 0 : i32
    %c0_i32_0 = arith.constant 0 : i32
    return %arg0, %c0_i32 : i32, i32
  }
  func.func @transform_1(%arg0: i32, %arg1: i32) -> (i32, i32) {
    %c0_i32 = arith.constant 0 : i32
    %c0_i32_0 = arith.constant 0 : i32
    return %c0_i32, %arg1 : i32, i32
  }
  func.func @transform_2(%arg0: i32, %arg1: i32) -> (i32, i32) {
    %c0_i32 = arith.constant 0 : i32
    return %arg0, %arg1 : i32, i32
  }
}

module attributes {stable_mosaic.version = 11 : i64} {
  func.func @aggregate_kernel(%arg0: i32, %arg1: i32, %arg2: i32, %arg3: memref<384x384xbf16, #tpu.memory_space<vmem>>, %arg4: memref<384x128xbf16, #tpu.memory_space<vmem>>, %arg5: memref<1x128xf32, #tpu.memory_space<vmem>>, %arg6: memref<384x128xf32, #tpu.memory_space<vmem>>) attributes {dimension_semantics = [#tpu.dimension_semantics<parallel>, #tpu.dimension_semantics<parallel>, #tpu.dimension_semantics<arbitrary>], iteration_bounds = array<i64: 1, 1, 1>, scalar_prefetch = 0 : i64, scratch_operands = 0 : i64, tpu.core_type = #tpu.core_type<tc>, window_params = [{transform_indices = @transform_0, window_bounds = array<i64: 384, 384>}, {transform_indices = @transform_1, window_bounds = array<i64: 384, 128>}, {transform_indices = @transform_2, window_bounds = array<i64: 1, 128>}, {transform_indices = @transform_3, window_bounds = array<i64: 384, 128>}]} {
    %c0_i32 = arith.constant 0 : i32
    %0 = arith.cmpi eq, %arg2, %c0_i32 : i32
    %1 = arith.extui %0 : i1 to i32
    %c0_i32_0 = arith.constant 0 : i32
    %2 = arith.cmpi ne, %1, %c0_i32_0 : i32
    scf.if %2 {
      %cst_10 = arith.constant 0.000000e+00 : f32
      %12 = vector.broadcast %cst_10 : f32 to vector<384x128xf32>
      %c0_11 = arith.constant 0 : index
      %c0_12 = arith.constant 0 : index
      %13 = vector.load %arg6[%c0_11, %c0_12] : memref<384x128xf32, #tpu.memory_space<vmem>>, vector<384x128xf32>
      tpu.vector_store %arg6[%c0_11, %c0_12], %12 {strides = array<i32>} : memref<384x128xf32, #tpu.memory_space<vmem>>, vector<384x128xf32>,
    } else {
    }
    %c0 = arith.constant 0 : index
    %c0_1 = arith.constant 0 : index
    %3 = vector.load %arg6[%c0, %c0_1] : memref<384x128xf32, #tpu.memory_space<vmem>>, vector<384x128xf32>
    %c0_2 = arith.constant 0 : index
    %c0_3 = arith.constant 0 : index
    %4 = vector.load %arg3[%c0_2, %c0_3] : memref<384x384xbf16, #tpu.memory_space<vmem>>, vector<384x384xbf16>
    %c0_4 = arith.constant 0 : index
    %c0_5 = arith.constant 0 : index
    %5 = vector.load %arg4[%c0_4, %c0_5] : memref<384x128xbf16, #tpu.memory_space<vmem>>, vector<384x128xbf16>
    %cst = arith.constant dense<0.000000e+00> : vector<384x128xf32>
    %6 = tpu.matmul %4, %5, %cst {dimension_numbers = #tpu.dot_dimension_numbers<[1], [0], [0], [1], [0, 0, 1, 1], [], []>} : vector<384x384xbf16>, vector<384x128xbf16>, vector<384x128xf32> -> vector<384x128xf32>
    %7 = arith.addf %3, %6 : vector<384x128xf32>
    %c0_6 = arith.constant 0 : index
    %c0_7 = arith.constant 0 : index
    %8 = vector.load %arg6[%c0_6, %c0_7] : memref<384x128xf32, #tpu.memory_space<vmem>>, vector<384x128xf32>
    tpu.vector_store %arg6[%c0_6, %c0_7], %7 {strides = array<i32>} : memref<384x128xf32, #tpu.memory_space<vmem>>, vector<384x128xf32>,
    %c0_i32_8 = arith.constant 0 : i32
    %9 = arith.cmpi eq, %arg2, %c0_i32_8 : i32
    %10 = arith.extui %9 : i1 to i32
    %c0_i32_9 = arith.constant 0 : i32
    %11 = arith.cmpi ne, %10, %c0_i32_9 : i32
    scf.if %11 {
      %c0_10 = arith.constant 0 : index
      %c0_11 = arith.constant 0 : index
      %12 = vector.load %arg6[%c0_10, %c0_11] : memref<384x128xf32, #tpu.memory_space<vmem>>, vector<384x128xf32>
      %c0_12 = arith.constant 0 : index
      %c0_13 = arith.constant 0 : index
      %13 = vector.load %arg5[%c0_12, %c0_13] : memref<1x128xf32, #tpu.memory_space<vmem>>, vector<1x128xf32>
      %14 = vector.broadcast %13 : vector<1x128xf32> to vector<384x128xf32>
      %15 = arith.addf %12, %14 : vector<384x128xf32>
      %c0_14 = arith.constant 0 : index
      %c0_15 = arith.constant 0 : index
      %16 = vector.load %arg6[%c0_14, %c0_15] : memref<384x128xf32, #tpu.memory_space<vmem>>, vector<384x128xf32>
      tpu.vector_store %arg6[%c0_14, %c0_15], %15 {strides = array<i32>} : memref<384x128xf32, #tpu.memory_space<vmem>>, vector<384x128xf32>,
    } else {
    }
    return
  }
  func.func @transform_0(%arg0: i32, %arg1: i32, %arg2: i32) -> (i32, i32) {
    %c0_i32 = arith.constant 0 : i32
    return %arg0, %arg2 : i32, i32
  }
  func.func @transform_1(%arg0: i32, %arg1: i32, %arg2: i32) -> (i32, i32) {
    %c0_i32 = arith.constant 0 : i32
    return %arg2, %arg1 : i32, i32
  }
  func.func @transform_2(%arg0: i32, %arg1: i32, %arg2: i32) -> (i32, i32) {
    %c0_i32 = arith.constant 0 : i32
    %c0_i32_0 = arith.constant 0 : i32
    return %c0_i32, %arg1 : i32, i32
  }
  func.func @transform_3(%arg0: i32, %arg1: i32, %arg2: i32) -> (i32, i32) {
    %c0_i32 = arith.constant 0 : i32
    return %arg0, %arg1 : i32, i32
  }
}

</mosaic_0001>

<llo_original>
// kernel: graph_convolution.2
$region0: #{graph_convolution.2}
  #allocation0 [shape = 'u32[]', space=smem, size = 0x4, offset = 0x4, fixed_abs, tag = 'smem constant byte address 0x4 - core index']
  #allocation1 [shape = 'u32[144,128]{1,0:T(1,128)}', space=vmem, size = 0x12000, scoped, tag = 'internal scratch']
  %s0 = inlined_call_operand.vmem [shape: bf16[384,128], index: 0, kind: input, shape index: {}]
  %s1 = inlined_call_operand.vmem [shape: bf16[128,128], index: 1, kind: input, shape index: {}]
  %s2 = inlined_call_operand.vmem [shape: bf16[384,128], index: 2, kind: output, shape index: {}]
  %s3 = sld [smem:[#allocation0]]
  $region18: #{graph_convolution.2} parent=0
    _
  %s5 = ssub.s32 1, %s3
  %s6 = scalar_select 0, %s5, %s3
  // Predicated region
  $region2: #{graph_convolution.2} parent=0 // pred_check
    _
  $region3: #{graph_convolution.2} parent=0 // pred_check_branch
    %8 = sbr.rel (0) target = $region5
  $region4: #{graph_convolution.2} parent=0 // pred_region
    _
  $region5: #{graph_convolution.2} parent=0 // pred_fallthru
    _
  // Predicated region
  $region6: #{graph_convolution.2} parent=0 // pred_check
    _
  $region7: #{graph_convolution.2} parent=0 // pred_check_branch
    %10 = sbr.rel (0) target = $region9
  $region8: #{graph_convolution.2} parent=0 // pred_region
    _
  $region9: #{graph_convolution.2} parent=0 // pred_fallthru
    _
  %v12 = vld [vmem:[%s0] sm:$0xf]
  %v13 = vld [vmem:[%s0 + $0x4] sm:$0xf]
  %v14 = vld [vmem:[%s0 + $0x8] sm:$0xf]
  %v15 = vld [vmem:[%s0 + $0xc] sm:$0xf]
  %v16 = vld [vmem:[%s0 + $0x10] sm:$0xf]
  %v17 = vld [vmem:[%s0 + $0x14] sm:$0xf]
  %v18 = vld [vmem:[%s0 + $0x18] sm:$0xf]
  %v19 = vld [vmem:[%s0 + $0x1c] sm:$0xf]
  %v20 = vld [vmem:[%s0 + $0x20] sm:$0xf]
  %v21 = vld [vmem:[%s0 + $0x24] sm:$0xf]
  %v22 = vld [vmem:[%s0 + $0x28] sm:$0xf]
  %v23 = vld [vmem:[%s0 + $0x2c] sm:$0xf]
  %v24 = vld [vmem:[%s0 + $0x30] sm:$0xf]
  %v25 = vld [vmem:[%s0 + $0x34] sm:$0xf]
  %v26 = vld [vmem:[%s0 + $0x38] sm:$0xf]
  %v27 = vld [vmem:[%s0 + $0x3c] sm:$0xf]
  %v28 = vld [vmem:[%s0 + $0x40] sm:$0xf]
  %v29 = vld [vmem:[%s0 + $0x44] sm:$0xf]
  %v30 = vld [vmem:[%s0 + $0x48] sm:$0xf]
  %v31 = vld [vmem:[%s0 + $0x4c] sm:$0xf]
  %v32 = vld [vmem:[%s0 + $0x50] sm:$0xf]
  %v33 = vld [vmem:[%s0 + $0x54] sm:$0xf]
  %v34 = vld [vmem:[%s0 + $0x58] sm:$0xf]
  %v35 = vld [vmem:[%s0 + $0x5c] sm:$0xf]
  %v36 = vld [vmem:[%s0 + $0x60] sm:$0xf]
  %v37 = vld [vmem:[%s0 + $0x64] sm:$0xf]
  %v38 = vld [vmem:[%s0 + $0x68] sm:$0xf]
  %v39 = vld [vmem:[%s0 + $0x6c] sm:$0xf]
  %v40 = vld [vmem:[%s0 + $0x70] sm:$0xf]
  %v41 = vld [vmem:[%s0 + $0x74] sm:$0xf]
  %v42 = vld [vmem:[%s0 + $0x78] sm:$0xf]
  %v43 = vld [vmem:[%s0 + $0x7c] sm:$0xf]
  %v44 = vld [vmem:[%s0 + $0x80] sm:$0xf]
  %v45 = vld [vmem:[%s0 + $0x84] sm:$0xf]
  %v46 = vld [vmem:[%s0 + $0x88] sm:$0xf]
  %v47 = vld [vmem:[%s0 + $0x8c] sm:$0xf]
  %v48 = vld [vmem:[%s0 + $0x90] sm:$0xf]
  %v49 = vld [vmem:[%s0 + $0x94] sm:$0xf]
  %v50 = vld [vmem:[%s0 + $0x98] sm:$0xf]
  %v51 = vld [vmem:[%s0 + $0x9c] sm:$0xf]
  %v52 = vld [vmem:[%s0 + $0xa0] sm:$0xf]
  %v53 = vld [vmem:[%s0 + $0xa4] sm:$0xf]
  %v54 = vld [vmem:[%s0 + $0xa8] sm:$0xf]
  %v55 = vld [vmem:[%s0 + $0xac] sm:$0xf]
  %v56 = vld [vmem:[%s0 + $0xb0] sm:$0xf]
  %v57 = vld [vmem:[%s0 + $0xb4] sm:$0xf]
  %v58 = vld [vmem:[%s0 + $0xb8] sm:$0xf]
  %v59 = vld [vmem:[%s0 + $0xbc] sm:$0xf]
  %v60 = vld [vmem:[%s1] sm:$0xf]
  %v61 = vld [vmem:[%s1 + $0x4] sm:$0xf]
  %v62 = vld [vmem:[%s1 + $0x8] sm:$0xf]
  %v63 = vld [vmem:[%s1 + $0xc] sm:$0xf]
  %v64 = vld [vmem:[%s1 + $0x10] sm:$0xf]
  %v65 = vld [vmem:[%s1 + $0x14] sm:$0xf]
  %v66 = vld [vmem:[%s1 + $0x18] sm:$0xf]
  %v67 = vld [vmem:[%s1 + $0x1c] sm:$0xf]
  %v68 = vld [vmem:[%s1 + $0x20] sm:$0xf]
  %v69 = vld [vmem:[%s1 + $0x24] sm:$0xf]
  %v70 = vld [vmem:[%s1 + $0x28] sm:$0xf]
  %v71 = vld [vmem:[%s1 + $0x2c] sm:$0xf]
  %v72 = vld [vmem:[%s1 + $0x30] sm:$0xf]
  %v73 = vld [vmem:[%s1 + $0x34] sm:$0xf]
  %v74 = vld [vmem:[%s1 + $0x38] sm:$0xf]
  %v75 = vld [vmem:[%s1 + $0x3c] sm:$0xf]
  %v124 = vunpack.c.l.b16 %v12
  %v125 = vunpack.c.l.b16 %v13
  %v126 = vunpack.c.l.b16 %v14
  %v127 = vunpack.c.l.b16 %v15
  %v128 = vunpack.c.l.b16 %v16
  %v129 = vunpack.c.l.b16 %v17
  %v130 = vunpack.c.l.b16 %v18
  %v131 = vunpack.c.l.b16 %v19
  %v132 = vunpack.c.l.b16 %v20
  %v133 = vunpack.c.l.b16 %v21
  %v134 = vunpack.c.l.b16 %v22
  %v135 = vunpack.c.l.b16 %v23
  %v136 = vunpack.c.l.b16 %v24
  %v137 = vunpack.c.l.b16 %v25
  %v138 = vunpack.c.l.b16 %v26
  %v139 = vunpack.c.l.b16 %v27
  %v140 = vunpack.c.l.b16 %v28
  %v141 = vunpack.c.l.b16 %v29
  %v142 = vunpack.c.l.b16 %v30
  %v143 = vunpack.c.l.b16 %v31
  %v144 = vunpack.c.l.b16 %v32
  %v145 = vunpack.c.l.b16 %v33
  %v146 = vunpack.c.l.b16 %v34
  %v147 = vunpack.c.l.b16 %v35
  %v148 = vunpack.c.l.b16 %v36
  %v149 = vunpack.c.l.b16 %v37
  %v150 = vunpack.c.l.b16 %v38
  %v151 = vunpack.c.l.b16 %v39
  %v152 = vunpack.c.l.b16 %v40
  %v153 = vunpack.c.l.b16 %v41
  %v154 = vunpack.c.l.b16 %v42
  %v155 = vunpack.c.l.b16 %v43
  %v156 = vunpack.c.l.b16 %v44
  %v157 = vunpack.c.l.b16 %v45
  %v158 = vunpack.c.l.b16 %v46
  %v159 = vunpack.c.l.b16 %v47
  %v160 = vunpack.c.l.b16 %v48
  %v161 = vunpack.c.l.b16 %v49
  %v162 = vunpack.c.l.b16 %v50
  %v163 = vunpack.c.l.b16 %v51
  %v164 = vunpack.c.l.b16 %v52
  %v165 = vunpack.c.l.b16 %v53
  %v166 = vunpack.c.l.b16 %v54
  %v167 = vunpack.c.l.b16 %v55
  %v168 = vunpack.c.l.b16 %v56
  %v169 = vunpack.c.l.b16 %v57
  %v170 = vunpack.c.l.b16 %v58
  %v171 = vunpack.c.l.b16 %v59
  %v172 = vpack.c.b16 %v125, %v124
  %v173 = vpack.c.b16 %v127, %v126
  %v174 = vpack.c.b16 %v129, %v128
  %v175 = vpack.c.b16 %v131, %v130
  %v176 = vpack.c.b16 %v133, %v132
  %v177 = vpack.c.b16 %v135, %v134
  %v178 = vpack.c.b16 %v137, %v136
  %v179 = vpack.c.b16 %v139, %v138
  %v180 = vpack.c.b16 %v141, %v140
  %v181 = vpack.c.b16 %v143, %v142
  %v182 = vpack.c.b16 %v145, %v144
  %v183 = vpack.c.b16 %v147, %v146
  %v184 = vpack.c.b16 %v149, %v148
  %v185 = vpack.c.b16 %v151, %v150
  %v186 = vpack.c.b16 %v153, %v152
  %v187 = vpack.c.b16 %v155, %v154
  %v188 = vpack.c.b16 %v157, %v156
  %v189 = vpack.c.b16 %v159, %v158
  %v190 = vpack.c.b16 %v161, %v160
  %v191 = vpack.c.b16 %v163, %v162
  %v192 = vpack.c.b16 %v165, %v164
  %v193 = vpack.c.b16 %v167, %v166
  %v194 = vpack.c.b16 %v169, %v168
  %v195 = vpack.c.b16 %v171, %v170
  %v236 = vunpack.c.l.b16 %v60
  %v237 = vunpack.c.l.b16 %v61
  %v238 = vunpack.c.l.b16 %v62
  %v239 = vunpack.c.l.b16 %v63
  %v240 = vunpack.c.l.b16 %v64
  %v241 = vunpack.c.l.b16 %v65
  %v242 = vunpack.c.l.b16 %v66
  %v243 = vunpack.c.l.b16 %v67
  %v244 = vunpack.c.l.b16 %v68
  %v245 = vunpack.c.l.b16 %v69
  %v246 = vunpack.c.l.b16 %v70
  %v247 = vunpack.c.l.b16 %v71
  %v248 = vunpack.c.l.b16 %v72
  %v249 = vunpack.c.l.b16 %v73
  %v250 = vunpack.c.l.b16 %v74
  %v251 = vunpack.c.l.b16 %v75
  %v252 = vpack.c.b16 %v237, %v236
  %v253 = vpack.c.b16 %v239, %v238
  %v254 = vpack.c.b16 %v241, %v240
  %v255 = vpack.c.b16 %v243, %v242
  %v256 = vpack.c.b16 %v245, %v244
  %v257 = vpack.c.b16 %v247, %v246
  %v258 = vpack.c.b16 %v249, %v248
  %v259 = vpack.c.b16 %v251, %v250
  %268 = vmatprep.subr.bf16.mxu0 0
  %269 = vmatpush1.bf16.msra.mxu0 %v252
  %270 = vmatprep.subr.bf16.mxu0 0
  %271 = vmatpush1.bf16.msra.mxu0 %v253
  %272 = vmatprep.subr.bf16.mxu0 0
  %273 = vmatpush1.bf16.msra.mxu0 %v254
  %274 = vmatprep.subr.bf16.mxu0 0
  %275 = vmatpush1.bf16.msra.mxu0 %v255
  %276 = vmatprep.subr.bf16.mxu0 0
  %277 = vmatpush1.bf16.msra.mxu0 %v256
  %278 = vmatprep.subr.bf16.mxu0 0
  %279 = vmatpush1.bf16.msra.mxu0 %v257
  %280 = vmatprep.subr.bf16.mxu0 0
  %281 = vmatpush1.bf16.msra.mxu0 %v258
  %282 = vmatprep.subr.bf16.mxu0 0
  %283 = vmatpush1.bf16.msra.mxu0 %v259
  %284 = vmatprep.subr.bf16.mxu0 0
  %285 = vmatpush1.bf16.msra.mxu0 0
  %286 = vmatprep.subr.bf16.mxu0 0
  %287 = vmatpush1.bf16.msra.mxu0 0
  %288 = vmatprep.subr.bf16.mxu0 0
  %289 = vmatpush1.bf16.msra.mxu0 0
  %290 = vmatprep.subr.bf16.mxu0 0
  %291 = vmatpush1.bf16.msra.mxu0 0
  %292 = vmatprep.subr.bf16.mxu0 0
  %293 = vmatpush1.bf16.msra.mxu0 0
  %294 = vmatprep.subr.bf16.mxu0 0
  %295 = vmatpush1.bf16.msra.mxu0 0
  %296 = vmatprep.subr.bf16.mxu0 0
  %297 = vmatpush1.bf16.msra.mxu0 0
  %298 = vmatprep.subr.bf16.mxu0 0
  %299 = vmatpush1.bf16.msra.mxu0 0
  %300 = vmatprep.mubr.bf16.mxu0 0
  %301 = vmatmul.mubr.bf16.gmra.mrb[0].mxu0 %v172
  %v302 = vpop.f32.mrb[0].mxu0
  %v303 = vadd.f32 0.0, %v302
  %v304 = vpop.f32.mrb[0].mxu0
  %v305 = vpop.f32.mrb[0].mxu0
  %v306 = vadd.f32 0.0, %v305
  %v307 = vpop.f32.mrb[0].mxu0
  %308 = vmatprep.mubr.bf16.mxu0 0
  %309 = vmatmul.mubr.bf16.gmra.mrb[0].mxu0 %v173
  %v310 = vpop.f32.mrb[0].mxu0
  %v311 = vadd.f32 0.0, %v310
  %v312 = vpop.f32.mrb[0].mxu0
  %v313 = vpop.f32.mrb[0].mxu0
  %v314 = vadd.f32 0.0, %v313
  %v315 = vpop.f32.mrb[0].mxu0
  %316 = vmatprep.mubr.bf16.mxu0 0
  %317 = vmatmul.mubr.bf16.gmra.mrb[0].mxu0 %v174
  %v318 = vpop.f32.mrb[0].mxu0
  %v319 = vadd.f32 0.0, %v318
  %v320 = vpop.f32.mrb[0].mxu0
  %v321 = vpop.f32.mrb[0].mxu0
  %v322 = vadd.f32 0.0, %v321
  %v323 = vpop.f32.mrb[0].mxu0
  %324 = vmatprep.mubr.bf16.mxu0 0
  %325 = vmatmul.mubr.bf16.gmra.mrb[0].mxu0 %v175
  %v326 = vpop.f32.mrb[0].mxu0
  %v327 = vadd.f32 0.0, %v326
  %v328 = vpop.f32.mrb[0].mxu0
  %v329 = vpop.f32.mrb[0].mxu0
  %v330 = vadd.f32 0.0, %v329
  %v331 = vpop.f32.mrb[0].mxu0
  %332 = vmatprep.mubr.bf16.mxu0 0
  %333 = vmatmul.mubr.bf16.gmra.mrb[0].mxu0 %v176
  %v334 = vpop.f32.mrb[0].mxu0
  %v335 = vadd.f32 0.0, %v334
  %v336 = vpop.f32.mrb[0].mxu0
  %v337 = vpop.f32.mrb[0].mxu0
  %v338 = vadd.f32 0.0, %v337
  %v339 = vpop.f32.mrb[0].mxu0
  %340 = vmatprep.mubr.bf16.mxu0 0
  %341 = vmatmul.mubr.bf16.gmra.mrb[0].mxu0 %v177
  %v342 = vpop.f32.mrb[0].mxu0
  %v343 = vadd.f32 0.0, %v342
  %v344 = vpop.f32.mrb[0].mxu0
  %v345 = vpop.f32.mrb[0].mxu0
  %v346 = vadd.f32 0.0, %v345
  %v347 = vpop.f32.mrb[0].mxu0
  %348 = vmatprep.mubr.bf16.mxu0 0
  %349 = vmatmul.mubr.bf16.gmra.mrb[0].mxu0 %v178
  %v350 = vpop.f32.mrb[0].mxu0
  %v351 = vadd.f32 0.0, %v350
  %v352 = vpop.f32.mrb[0].mxu0
  %v353 = vpop.f32.mrb[0].mxu0
  %v354 = vadd.f32 0.0, %v353
  %v355 = vpop.f32.mrb[0].mxu0
  %356 = vmatprep.mubr.bf16.mxu0 0
  %357 = vmatmul.mubr.bf16.gmra.mrb[0].mxu0 %v179
  %v358 = vpop.f32.mrb[0].mxu0
  %v359 = vadd.f32 0.0, %v358
  %v360 = vpop.f32.mrb[0].mxu0
  %v361 = vpop.f32.mrb[0].mxu0
  %v362 = vadd.f32 0.0, %v361
  %v363 = vpop.f32.mrb[0].mxu0
  %364 = vmatprep.mubr.bf16.mxu0 0
  %365 = vmatmul.mubr.bf16.gmra.mrb[0].mxu0 %v180
  %v366 = vpop.f32.mrb[0].mxu0
  %v367 = vadd.f32 0.0, %v366
  %v368 = vpop.f32.mrb[0].mxu0
  %v369 = vpop.f32.mrb[0].mxu0
  %v370 = vadd.f32 0.0, %v369
  %v371 = vpop.f32.mrb[0].mxu0
  %372 = vmatprep.mubr.bf16.mxu0 0
  %373 = vmatmul.mubr.bf16.gmra.mrb[0].mxu0 %v181
  %v374 = vpop.f32.mrb[0].mxu0
  %v375 = vadd.f32 0.0, %v374
  %v376 = vpop.f32.mrb[0].mxu0
  %v377 = vpop.f32.mrb[0].mxu0
  %v378 = vadd.f32 0.0, %v377
  %v379 = vpop.f32.mrb[0].mxu0
  %380 = vmatprep.mubr.bf16.mxu0 0
  %381 = vmatmul.mubr.bf16.gmra.mrb[0].mxu0 %v182
  %v382 = vpop.f32.mrb[0].mxu0
  %v383 = vadd.f32 0.0, %v382
  %v384 = vpop.f32.mrb[0].mxu0
  %v385 = vpop.f32.mrb[0].mxu0
  %v386 = vadd.f32 0.0, %v385
  %v387 = vpop.f32.mrb[0].mxu0
  %388 = vmatprep.mubr.bf16.mxu0 0
  %389 = vmatmul.mubr.bf16.gmra.mrb[0].mxu0 %v183
  %v390 = vpop.f32.mrb[0].mxu0
  %v391 = vadd.f32 0.0, %v390
  %v392 = vpop.f32.mrb[0].mxu0
  %v393 = vpop.f32.mrb[0].mxu0
  %v394 = vadd.f32 0.0, %v393
  %v395 = vpop.f32.mrb[0].mxu0
  %396 = vmatprep.mubr.bf16.mxu0 0
  %397 = vmatmul.mubr.bf16.gmra.mrb[0].mxu0 %v184
  %v398 = vpop.f32.mrb[0].mxu0
  %v399 = vadd.f32 0.0, %v398
  %v400 = vpop.f32.mrb[0].mxu0
  %v401 = vpop.f32.mrb[0].mxu0
  %v402 = vadd.f32 0.0, %v401
  %v403 = vpop.f32.mrb[0].mxu0
  %404 = vmatprep.mubr.bf16.mxu0 0
  %405 = vmatmul.mubr.bf16.gmra.mrb[0].mxu0 %v185
  %v406 = vpop.f32.mrb[0].mxu0
  %v407 = vadd.f32 0.0, %v406
  %v408 = vpop.f32.mrb[0].mxu0
  %v409 = vpop.f32.mrb[0].mxu0
  %v410 = vadd.f32 0.0, %v409
  %v411 = vpop.f32.mrb[0].mxu0
  %412 = vmatprep.mubr.bf16.mxu0 0
  %413 = vmatmul.mubr.bf16.gmra.mrb[0].mxu0 %v186
  %v414 = vpop.f32.mrb[0].mxu0
  %v415 = vadd.f32 0.0, %v414
  %v416 = vpop.f32.mrb[0].mxu0
  %v417 = vpop.f32.mrb[0].mxu0
  %v418 = vadd.f32 0.0, %v417
  %v419 = vpop.f32.mrb[0].mxu0
  %420 = vmatprep.mubr.bf16.mxu0 0
  %421 = vmatmul.mubr.bf16.gmra.mrb[0].mxu0 %v187
  %v422 = vpop.f32.mrb[0].mxu0
  %v423 = vadd.f32 0.0, %v422
  %v424 = vpop.f32.mrb[0].mxu0
  %v425 = vpop.f32.mrb[0].mxu0
  %v426 = vadd.f32 0.0, %v425
  %v427 = vpop.f32.mrb[0].mxu0
  %428 = vmatprep.mubr.bf16.mxu0 0
  %429 = vmatmul.mubr.bf16.gmra.mrb[0].mxu0 %v188
  %v430 = vpop.f32.mrb[0].mxu0
  %v431 = vadd.f32 0.0, %v430
  %v432 = vpop.f32.mrb[0].mxu0
  %v433 = vpop.f32.mrb[0].mxu0
  %v434 = vadd.f32 0.0, %v433
  %v435 = vpop.f32.mrb[0].mxu0
  %436 = vmatprep.mubr.bf16.mxu0 0
  %437 = vmatmul.mubr.bf16.gmra.mrb[0].mxu0 %v189
  %v438 = vpop.f32.mrb[0].mxu0
  %v439 = vadd.f32 0.0, %v438
  %v440 = vpop.f32.mrb[0].mxu0
  %v441 = vpop.f32.mrb[0].mxu0
  %v442 = vadd.f32 0.0, %v441
  %v443 = vpop.f32.mrb[0].mxu0
  %444 = vmatprep.mubr.bf16.mxu0 0
  %445 = vmatmul.mubr.bf16.gmra.mrb[0].mxu0 %v190
  %v446 = vpop.f32.mrb[0].mxu0
  %v447 = vadd.f32 0.0, %v446
  %v448 = vpop.f32.mrb[0].mxu0
  %v449 = vpop.f32.mrb[0].mxu0
  %v450 = vadd.f32 0.0, %v449
  %v451 = vpop.f32.mrb[0].mxu0
  %452 = vmatprep.mubr.bf16.mxu0 0
  %453 = vmatmul.mubr.bf16.gmra.mrb[0].mxu0 %v191
  %v454 = vpop.f32.mrb[0].mxu0
  %v455 = vadd.f32 0.0, %v454
  %v456 = vpop.f32.mrb[0].mxu0
  %v457 = vpop.f32.mrb[0].mxu0
  %v458 = vadd.f32 0.0, %v457
  %v459 = vpop.f32.mrb[0].mxu0
  %460 = vmatprep.mubr.bf16.mxu0 0
  %461 = vmatmul.mubr.bf16.gmra.mrb[0].mxu0 %v192
  %v462 = vpop.f32.mrb[0].mxu0
  %v463 = vadd.f32 0.0, %v462
  %v464 = vpop.f32.mrb[0].mxu0
  %v465 = vpop.f32.mrb[0].mxu0
  %v466 = vadd.f32 0.0, %v465
  %v467 = vpop.f32.mrb[0].mxu0
  %468 = vmatprep.mubr.bf16.mxu0 0
  %469 = vmatmul.mubr.bf16.gmra.mrb[0].mxu0 %v193
  %v470 = vpop.f32.mrb[0].mxu0
  %v471 = vadd.f32 0.0, %v470
  %v472 = vpop.f32.mrb[0].mxu0
  %v473 = vpop.f32.mrb[0].mxu0
  %v474 = vadd.f32 0.0, %v473
  %v475 = vpop.f32.mrb[0].mxu0
  %476 = vmatprep.mubr.bf16.mxu0 0
  %477 = vmatmul.mubr.bf16.gmra.mrb[0].mxu0 %v194
  %v478 = vpop.f32.mrb[0].mxu0
  %v479 = vadd.f32 0.0, %v478
  %v480 = vpop.f32.mrb[0].mxu0
  %v481 = vpop.f32.mrb[0].mxu0
  %v482 = vadd.f32 0.0, %v481
  %v483 = vpop.f32.mrb[0].mxu0
  %484 = vmatprep.mubr.bf16.mxu0 0
  %485 = vmatmul.mubr.bf16.gmra.mrb[0].mxu0 %v195
  %v486 = vpop.f32.mrb[0].mxu0
  %v487 = vadd.f32 0.0, %v486
  %v488 = vpop.f32.mrb[0].mxu0
  %v489 = vpop.f32.mrb[0].mxu0
  %v490 = vadd.f32 0.0, %v489
  %v491 = vpop.f32.mrb[0].mxu0
  %492 = vdwg.mxu0
  %v493 = vpack.c.bf16 %v306, %v303
  %v494 = vpack.c.bf16 %v314, %v311
  %v495 = vpack.c.bf16 %v322, %v319
  %v496 = vpack.c.bf16 %v330, %v327
  %v497 = vpack.c.bf16 %v338, %v335
  %v498 = vpack.c.bf16 %v346, %v343
  %v499 = vpack.c.bf16 %v354, %v351
  %v500 = vpack.c.bf16 %v362, %v359
  %v501 = vpack.c.bf16 %v370, %v367
  %v502 = vpack.c.bf16 %v378, %v375
  %v503 = vpack.c.bf16 %v386, %v383
  %v504 = vpack.c.bf16 %v394, %v391
  %v505 = vpack.c.bf16 %v402, %v399
  %v506 = vpack.c.bf16 %v410, %v407
  %v507 = vpack.c.bf16 %v418, %v415
  %v508 = vpack.c.bf16 %v426, %v423
  %v509 = vpack.c.bf16 %v434, %v431
  %v510 = vpack.c.bf16 %v442, %v439
  %v511 = vpack.c.bf16 %v450, %v447
  %v512 = vpack.c.bf16 %v458, %v455
  %v513 = vpack.c.bf16 %v466, %v463
  %v514 = vpack.c.bf16 %v474, %v471
  %v515 = vpack.c.bf16 %v482, %v479
  %v516 = vpack.c.bf16 %v490, %v487
  %v541 = vunpack.c.l.b16 %v493
  %v542 = vunpack.c.h.b16 %v493
  %v543 = vunpack.c.l.b16 %v494
  %v544 = vunpack.c.h.b16 %v494
  %v545 = vunpack.c.l.b16 %v495
  %v546 = vunpack.c.h.b16 %v495
  %v547 = vunpack.c.l.b16 %v496
  %v548 = vunpack.c.h.b16 %v496
  %v549 = vunpack.c.l.b16 %v497
  %v550 = vunpack.c.h.b16 %v497
  %v551 = vunpack.c.l.b16 %v498
  %v552 = vunpack.c.h.b16 %v498
  %v553 = vunpack.c.l.b16 %v499
  %v554 = vunpack.c.h.b16 %v499
  %v555 = vunpack.c.l.b16 %v500
  %v556 = vunpack.c.h.b16 %v500
  %v557 = vunpack.c.l.b16 %v501
  %v558 = vunpack.c.h.b16 %v501
  %v559 = vunpack.c.l.b16 %v502
  %v560 = vunpack.c.h.b16 %v502
  %v561 = vunpack.c.l.b16 %v503
  %v562 = vunpack.c.h.b16 %v503
  %v563 = vunpack.c.l.b16 %v504
  %v564 = vunpack.c.h.b16 %v504
  %v565 = vunpack.c.l.b16 %v505
  %v566 = vunpack.c.h.b16 %v505
  %v567 = vunpack.c.l.b16 %v506
  %v568 = vunpack.c.h.b16 %v506
  %v569 = vunpack.c.l.b16 %v507
  %v570 = vunpack.c.h.b16 %v507
  %v571 = vunpack.c.l.b16 %v508
  %v572 = vunpack.c.h.b16 %v508
  %v573 = vunpack.c.l.b16 %v509
  %v574 = vunpack.c.h.b16 %v509
  %v575 = vunpack.c.l.b16 %v510
  %v576 = vunpack.c.h.b16 %v510
  %v577 = vunpack.c.l.b16 %v511
  %v578 = vunpack.c.h.b16 %v511
  %v579 = vunpack.c.l.b16 %v512
  %v580 = vunpack.c.h.b16 %v512
  %v581 = vunpack.c.l.b16 %v513
  %v582 = vunpack.c.h.b16 %v513
  %v583 = vunpack.c.l.b16 %v514
  %v584 = vunpack.c.h.b16 %v514
  %v585 = vunpack.c.l.b16 %v515
  %v586 = vunpack.c.h.b16 %v515
  %v587 = vunpack.c.l.b16 %v516
  %v588 = vunpack.c.h.b16 %v516
  %v589 = vpack.c.b16 %v541, %v541
  %v590 = vpack.c.b16 %v542, %v542
  %v591 = vpack.c.b16 %v543, %v543
  %v592 = vpack.c.b16 %v544, %v544
  %v593 = vpack.c.b16 %v545, %v545
  %v594 = vpack.c.b16 %v546, %v546
  %v595 = vpack.c.b16 %v547, %v547
  %v596 = vpack.c.b16 %v548, %v548
  %v597 = vpack.c.b16 %v549, %v549
  %v598 = vpack.c.b16 %v550, %v550
  %v599 = vpack.c.b16 %v551, %v551
  %v600 = vpack.c.b16 %v552, %v552
  %v601 = vpack.c.b16 %v553, %v553
  %v602 = vpack.c.b16 %v554, %v554
  %v603 = vpack.c.b16 %v555, %v555
  %v604 = vpack.c.b16 %v556, %v556
  %v605 = vpack.c.b16 %v557, %v557
  %v606 = vpack.c.b16 %v558, %v558
  %v607 = vpack.c.b16 %v559, %v559
  %v608 = vpack.c.b16 %v560, %v560
  %v609 = vpack.c.b16 %v561, %v561
  %v610 = vpack.c.b16 %v562, %v562
  %v611 = vpack.c.b16 %v563, %v563
  %v612 = vpack.c.b16 %v564, %v564
  %v613 = vpack.c.b16 %v565, %v565
  %v614 = vpack.c.b16 %v566, %v566
  %v615 = vpack.c.b16 %v567, %v567
  %v616 = vpack.c.b16 %v568, %v568
  %v617 = vpack.c.b16 %v569, %v569
  %v618 = vpack.c.b16 %v570, %v570
  %v619 = vpack.c.b16 %v571, %v571
  %v620 = vpack.c.b16 %v572, %v572
  %v621 = vpack.c.b16 %v573, %v573
  %v622 = vpack.c.b16 %v574, %v574
  %v623 = vpack.c.b16 %v575, %v575
  %v624 = vpack.c.b16 %v576, %v576
  %v625 = vpack.c.b16 %v577, %v577
  %v626 = vpack.c.b16 %v578, %v578
  %v627 = vpack.c.b16 %v579, %v579
  %v628 = vpack.c.b16 %v580, %v580
  %v629 = vpack.c.b16 %v581, %v581
  %v630 = vpack.c.b16 %v582, %v582
  %v631 = vpack.c.b16 %v583, %v583
  %v632 = vpack.c.b16 %v584, %v584
  %v633 = vpack.c.b16 %v585, %v585
  %v634 = vpack.c.b16 %v586, %v586
  %v635 = vpack.c.b16 %v587, %v587
  %v636 = vpack.c.b16 %v588, %v588
  %685 = vst [vmem:[%s2] sm:$0xf] %v589
  %686 = vst [vmem:[%s2 + $0x4] sm:$0xf] %v590
  %687 = vst [vmem:[%s2 + $0x8] sm:$0xf] %v591
  %688 = vst [vmem:[%s2 + $0xc] sm:$0xf] %v592
  %689 = vst [vmem:[%s2 + $0x10] sm:$0xf] %v593
  %690 = vst [vmem:[%s2 + $0x14] sm:$0xf] %v594
  %691 = vst [vmem:[%s2 + $0x18] sm:$0xf] %v595
  %692 = vst [vmem:[%s2 + $0x1c] sm:$0xf] %v596
  %693 = vst [vmem:[%s2 + $0x20] sm:$0xf] %v597
  %694 = vst [vmem:[%s2 + $0x24] sm:$0xf] %v598
  %695 = vst [vmem:[%s2 + $0x28] sm:$0xf] %v599
  %696 = vst [vmem:[%s2 + $0x2c] sm:$0xf] %v600
  %697 = vst [vmem:[%s2 + $0x30] sm:$0xf] %v601
  %698 = vst [vmem:[%s2 + $0x34] sm:$0xf] %v602
  %699 = vst [vmem:[%s2 + $0x38] sm:$0xf] %v603
  %700 = vst [vmem:[%s2 + $0x3c] sm:$0xf] %v604
  %701 = vst [vmem:[%s2 + $0x40] sm:$0xf] %v605
  %702 = vst [vmem:[%s2 + $0x44] sm:$0xf] %v606
  %703 = vst [vmem:[%s2 + $0x48] sm:$0xf] %v607
  %704 = vst [vmem:[%s2 + $0x4c] sm:$0xf] %v608
  %705 = vst [vmem:[%s2 + $0x50] sm:$0xf] %v609
  %706 = vst [vmem:[%s2 + $0x54] sm:$0xf] %v610
  %707 = vst [vmem:[%s2 + $0x58] sm:$0xf] %v611
  %708 = vst [vmem:[%s2 + $0x5c] sm:$0xf] %v612
  %709 = vst [vmem:[%s2 + $0x60] sm:$0xf] %v613
  %710 = vst [vmem:[%s2 + $0x64] sm:$0xf] %v614
  %711 = vst [vmem:[%s2 + $0x68] sm:$0xf] %v615
  %712 = vst [vmem:[%s2 + $0x6c] sm:$0xf] %v616
  %713 = vst [vmem:[%s2 + $0x70] sm:$0xf] %v617
  %714 = vst [vmem:[%s2 + $0x74] sm:$0xf] %v618
  %715 = vst [vmem:[%s2 + $0x78] sm:$0xf] %v619
  %716 = vst [vmem:[%s2 + $0x7c] sm:$0xf] %v620
  %717 = vst [vmem:[%s2 + $0x80] sm:$0xf] %v621
  %718 = vst [vmem:[%s2 + $0x84] sm:$0xf] %v622
  %719 = vst [vmem:[%s2 + $0x88] sm:$0xf] %v623
  %720 = vst [vmem:[%s2 + $0x8c] sm:$0xf] %v624
  %721 = vst [vmem:[%s2 + $0x90] sm:$0xf] %v625
  %722 = vst [vmem:[%s2 + $0x94] sm:$0xf] %v626
  %723 = vst [vmem:[%s2 + $0x98] sm:$0xf] %v627
  %724 = vst [vmem:[%s2 + $0x9c] sm:$0xf] %v628
  %725 = vst [vmem:[%s2 + $0xa0] sm:$0xf] %v629
  %726 = vst [vmem:[%s2 + $0xa4] sm:$0xf] %v630
  %727 = vst [vmem:[%s2 + $0xa8] sm:$0xf] %v631
  %728 = vst [vmem:[%s2 + $0xac] sm:$0xf] %v632
  %729 = vst [vmem:[%s2 + $0xb0] sm:$0xf] %v633
  %730 = vst [vmem:[%s2 + $0xb4] sm:$0xf] %v634
  %731 = vst [vmem:[%s2 + $0xb8] sm:$0xf] %v635
  %732 = vst [vmem:[%s2 + $0xbc] sm:$0xf] %v636
  // Predicated region
  $region10: #{graph_convolution.2} parent=0 // pred_check
    _
  $region11: #{graph_convolution.2} parent=0 // pred_check_branch
    %734 = sbr.rel (0) target = $region13
  $region12: #{graph_convolution.2} parent=0 // pred_region
    _
  $region13: #{graph_convolution.2} parent=0 // pred_fallthru
    _
  // Predicated region
  $region14: #{graph_convolution.2} parent=0 // pred_check
    _
  $region15: #{graph_convolution.2} parent=0 // pred_check_branch
    %736 = sbr.rel (0) target = $region17
  $region16: #{graph_convolution.2} parent=0 // pred_region
    _
  $region17: #{graph_convolution.2} parent=0 // pred_fallthru
    _

// kernel: graph_convolution.3
$region0: #{graph_convolution.3}
  #allocation0 [shape = 'u32[]', space=smem, size = 0x4, offset = 0x4, fixed_abs, tag = 'smem constant byte address 0x4 - core index']
  #allocation1 [shape = 'u32[144,128]{1,0:T(1,128)}', space=vmem, size = 0x12000, scoped, tag = 'internal scratch']
  %s0 = inlined_call_operand.vmem [shape: bf16[384,384], index: 0, kind: input, shape index: {}]
  %s1 = inlined_call_operand.vmem [shape: bf16[384,128], index: 1, kind: input, shape index: {}]
  %s2 = inlined_call_operand.vmem [shape: f32[1,128], index: 2, kind: input, shape index: {}]
  %s3 = inlined_call_operand.vmem [shape: f32[384,128], index: 3, kind: output, shape index: {}]
  %s4 = sld [smem:[#allocation0]]
  $region30: #{graph_convolution.3} parent=0
    _
  %s6 = ssub.s32 1, %s4
  %s7 = scalar_select 0, %s6, %s4
  // Predicated region
  $region2: #{graph_convolution.3} parent=0 // pred_check
    _
  $region3: #{graph_convolution.3} parent=0 // pred_check_branch
    %9 = sbr.rel (0) target = $region5
  $region4: #{graph_convolution.3} parent=0 // pred_region
    _
  $region5: #{graph_convolution.3} parent=0 // pred_fallthru
    _
  // Predicated region
  $region6: #{graph_convolution.3} parent=0 // pred_check
    _
  $region7: #{graph_convolution.3} parent=0 // pred_check_branch
    %11 = sbr.rel (0) target = $region9
  $region8: #{graph_convolution.3} parent=0 // pred_region
    _
  $region9: #{graph_convolution.3} parent=0 // pred_fallthru
    _
  // Predicated region
  $region10: #{graph_convolution.3} parent=0 // pred_check
    _
  $region11: #{graph_convolution.3} parent=0 // pred_check_branch
    %13 = sbr.rel (0) target = $region13
  $region12: #{graph_convolution.3} parent=0 // pred_region
    _
  $region13: #{graph_convolution.3} parent=0 // pred_fallthru
    _
  %p15 = scmp.eq.s32.totalorder 0, 0
  // Predicated region
  $region14: #{graph_convolution.3} parent=0 // pred_check
    %p16 = pneg %p15
  $region15: #{graph_convolution.3} parent=0 // pred_check_branch
    %18 = sbr.rel (%p16) target = $region17
  $region16: #{graph_convolution.3} parent=0 // pred_region
    %19 = vst [vmem:[%s3] sm:$0xff] 0.0
    %20 = vst [vmem:[%s3 + $0x8] sm:$0xff] 0.0
    %21 = vst [vmem:[%s3 + $0x10] sm:$0xff] 0.0
    %22 = vst [vmem:[%s3 + $0x18] sm:$0xff] 0.0
    %23 = vst [vmem:[%s3 + $0x20] sm:$0xff] 0.0
    %24 = vst [vmem:[%s3 + $0x28] sm:$0xff] 0.0
    %25 = vst [vmem:[%s3 + $0x30] sm:$0xff] 0.0
    %26 = vst [vmem:[%s3 + $0x38] sm:$0xff] 0.0
    %27 = vst [vmem:[%s3 + $0x40] sm:$0xff] 0.0
    %28 = vst [vmem:[%s3 + $0x48] sm:$0xff] 0.0
    %29 = vst [vmem:[%s3 + $0x50] sm:$0xff] 0.0
    %30 = vst [vmem:[%s3 + $0x58] sm:$0xff] 0.0
    %31 = vst [vmem:[%s3 + $0x60] sm:$0xff] 0.0
    %32 = vst [vmem:[%s3 + $0x68] sm:$0xff] 0.0
    %33 = vst [vmem:[%s3 + $0x70] sm:$0xff] 0.0
    %34 = vst [vmem:[%s3 + $0x78] sm:$0xff] 0.0
    %35 = vst [vmem:[%s3 + $0x80] sm:$0xff] 0.0
    %36 = vst [vmem:[%s3 + $0x88] sm:$0xff] 0.0
    %37 = vst [vmem:[%s3 + $0x90] sm:$0xff] 0.0
    %38 = vst [vmem:[%s3 + $0x98] sm:$0xff] 0.0
    %39 = vst [vmem:[%s3 + $0xa0] sm:$0xff] 0.0
    %40 = vst [vmem:[%s3 + $0xa8] sm:$0xff] 0.0
    %41 = vst [vmem:[%s3 + $0xb0] sm:$0xff] 0.0
    %42 = vst [vmem:[%s3 + $0xb8] sm:$0xff] 0.0
    %43 = vst [vmem:[%s3 + $0xc0] sm:$0xff] 0.0
    %44 = vst [vmem:[%s3 + $0xc8] sm:$0xff] 0.0
    %45 = vst [vmem:[%s3 + $0xd0] sm:$0xff] 0.0
    %46 = vst [vmem:[%s3 + $0xd8] sm:$0xff] 0.0
    %47 = vst [vmem:[%s3 + $0xe0] sm:$0xff] 0.0
    %48 = vst [vmem:[%s3 + $0xe8] sm:$0xff] 0.0
    %49 = vst [vmem:[%s3 + $0xf0] sm:$0xff] 0.0
    %50 = vst [vmem:[%s3 + $0xf8] sm:$0xff] 0.0
    %51 = vst [vmem:[%s3 + $0x100] sm:$0xff] 0.0
    %52 = vst [vmem:[%s3 + $0x108] sm:$0xff] 0.0
    %53 = vst [vmem:[%s3 + $0x110] sm:$0xff] 0.0
    %54 = vst [vmem:[%s3 + $0x118] sm:$0xff] 0.0
    %55 = vst [vmem:[%s3 + $0x120] sm:$0xff] 0.0
    %56 = vst [vmem:[%s3 + $0x128] sm:$0xff] 0.0
    %57 = vst [vmem:[%s3 + $0x130] sm:$0xff] 0.0
    %58 = vst [vmem:[%s3 + $0x138] sm:$0xff] 0.0
    %59 = vst [vmem:[%s3 + $0x140] sm:$0xff] 0.0
    %60 = vst [vmem:[%s3 + $0x148] sm:$0xff] 0.0
    %61 = vst [vmem:[%s3 + $0x150] sm:$0xff] 0.0
    %62 = vst [vmem:[%s3 + $0x158] sm:$0xff] 0.0
    %63 = vst [vmem:[%s3 + $0x160] sm:$0xff] 0.0
    %64 = vst [vmem:[%s3 + $0x168] sm:$0xff] 0.0
    %65 = vst [vmem:[%s3 + $0x170] sm:$0xff] 0.0
    %66 = vst [vmem:[%s3 + $0x178] sm:$0xff] 0.0
  $region17: #{graph_convolution.3} parent=0 // pred_fallthru
    _
  %v67 = vld [vmem:[%s3] sm:$0xff]
  %v68 = vld [vmem:[%s3 + $0x8] sm:$0xff]
  %v69 = vld [vmem:[%s3 + $0x10] sm:$0xff]
  %v70 = vld [vmem:[%s3 + $0x18] sm:$0xff]
  %v71 = vld [vmem:[%s3 + $0x20] sm:$0xff]
  %v72 = vld [vmem:[%s3 + $0x28] sm:$0xff]
  %v73 = vld [vmem:[%s3 + $0x30] sm:$0xff]
  %v74 = vld [vmem:[%s3 + $0x38] sm:$0xff]
  %v75 = vld [vmem:[%s3 + $0x40] sm:$0xff]
  %v76 = vld [vmem:[%s3 + $0x48] sm:$0xff]
  %v77 = vld [vmem:[%s3 + $0x50] sm:$0xff]
  %v78 = vld [vmem:[%s3 + $0x58] sm:$0xff]
  %v79 = vld [vmem:[%s3 + $0x60] sm:$0xff]
  %v80 = vld [vmem:[%s3 + $0x68] sm:$0xff]
  %v81 = vld [vmem:[%s3 + $0x70] sm:$0xff]
  %v82 = vld [vmem:[%s3 + $0x78] sm:$0xff]
  %v83 = vld [vmem:[%s3 + $0x80] sm:$0xff]
  %v84 = vld [vmem:[%s3 + $0x88] sm:$0xff]
  %v85 = vld [vmem:[%s3 + $0x90] sm:$0xff]
  %v86 = vld [vmem:[%s3 + $0x98] sm:$0xff]
  %v87 = vld [vmem:[%s3 + $0xa0] sm:$0xff]
  %v88 = vld [vmem:[%s3 + $0xa8] sm:$0xff]
  %v89 = vld [vmem:[%s3 + $0xb0] sm:$0xff]
  %v90 = vld [vmem:[%s3 + $0xb8] sm:$0xff]
  %v91 = vld [vmem:[%s3 + $0xc0] sm:$0xff]
  %v92 = vld [vmem:[%s3 + $0xc8] sm:$0xff]
  %v93 = vld [vmem:[%s3 + $0xd0] sm:$0xff]
  %v94 = vld [vmem:[%s3 + $0xd8] sm:$0xff]
  %v95 = vld [vmem:[%s3 + $0xe0] sm:$0xff]
  %v96 = vld [vmem:[%s3 + $0xe8] sm:$0xff]
  %v97 = vld [vmem:[%s3 + $0xf0] sm:$0xff]
  %v98 = vld [vmem:[%s3 + $0xf8] sm:$0xff]
  %v99 = vld [vmem:[%s3 + $0x100] sm:$0xff]
  %v100 = vld [vmem:[%s3 + $0x108] sm:$0xff]
  %v101 = vld [vmem:[%s3 + $0x110] sm:$0xff]
  %v102 = vld [vmem:[%s3 + $0x118] sm:$0xff]
  %v103 = vld [vmem:[%s3 + $0x120] sm:$0xff]
  %v104 = vld [vmem:[%s3 + $0x128] sm:$0xff]
  %v105 = vld [vmem:[%s3 + $0x130] sm:$0xff]
  %v106 = vld [vmem:[%s3 + $0x138] sm:$0xff]
  %v107 = vld [vmem:[%s3 + $0x140] sm:$0xff]
  %v108 = vld [vmem:[%s3 + $0x148] sm:$0xff]
  %v109 = vld [vmem:[%s3 + $0x150] sm:$0xff]
  %v110 = vld [vmem:[%s3 + $0x158] sm:$0xff]
  %v111 = vld [vmem:[%s3 + $0x160] sm:$0xff]
  %v112 = vld [vmem:[%s3 + $0x168] sm:$0xff]
  %v113 = vld [vmem:[%s3 + $0x170] sm:$0xff]
  %v114 = vld [vmem:[%s3 + $0x178] sm:$0xff]
  %v115 = vld [vmem:[%s0] sm:$0xff]
  %v116 = vld [vmem:[%s0 + $0x8] sm:$0xf]
  %v117 = vld [vmem:[%s0 + $0xc] sm:$0xff]
  %v118 = vld [vmem:[%s0 + $0x14] sm:$0xf]
  %v119 = vld [vmem:[%s0 + $0x18] sm:$0xff]
  %v120 = vld [vmem:[%s0 + $0x20] sm:$0xf]
  %v121 = vld [vmem:[%s0 + $0x24] sm:$0xff]
  %v122 = vld [vmem:[%s0 + $0x2c] sm:$0xf]
  %v123 = vld [vmem:[%s0 + $0x30] sm:$0xff]
  %v124 = vld [vmem:[%s0 + $0x38] sm:$0xf]
  %v125 = vld [vmem:[%s0 + $0x3c] sm:$0xff]
  %v126 = vld [vmem:[%s0 + $0x44] sm:$0xf]
  %v127 = vld [vmem:[%s0 + $0x48] sm:$0xff]
  %v128 = vld [vmem:[%s0 + $0x50] sm:$0xf]
  %v129 = vld [vmem:[%s0 + $0x54] sm:$0xff]
  %v130 = vld [vmem:[%s0 + $0x5c] sm:$0xf]
  %v131 = vld [vmem:[%s0 + $0x60] sm:$0xff]
  %v132 = vld [vmem:[%s0 + $0x68] sm:$0xf]
  %v133 = vld [vmem:[%s0 + $0x6c] sm:$0xff]
  %v134 = vld [vmem:[%s0 + $0x74] sm:$0xf]
  %v135 = vld [vmem:[%s0 + $0x78] sm:$0xff]
  %v136 = vld [vmem:[%s0 + $0x80] sm:$0xf]
  %v137 = vld [vmem:[%s0 + $0x84] sm:$0xff]
  %v138 = vld [vmem:[%s0 + $0x8c] sm:$0xf]
  %v139 = vld [vmem:[%s0 + $0x90] sm:$0xff]
  %v140 = vld [vmem:[%s0 + $0x98] sm:$0xf]
  %v141 = vld [vmem:[%s0 + $0x9c] sm:$0xff]
  %v142 = vld [vmem:[%s0 + $0xa4] sm:$0xf]
  %v143 = vld [vmem:[%s0 + $0xa8] sm:$0xff]
  %v144 = vld [vmem:[%s0 + $0xb0] sm:$0xf]
  %v145 = vld [vmem:[%s0 + $0xb4] sm:$0xff]
  %v146 = vld [vmem:[%s0 + $0xbc] sm:$0xf]
  %v147 = vld [vmem:[%s0 + $0xc0] sm:$0xff]
  %v148 = vld [vmem:[%s0 + $0xc8] sm:$0xf]
  %v149 = vld [vmem:[%s0 + $0xcc] sm:$0xff]
  %v150 = vld [vmem:[%s0 + $0xd4] sm:$0xf]
  %v151 = vld [vmem:[%s0 + $0xd8] sm:$0xff]
  %v152 = vld [vmem:[%s0 + $0xe0] sm:$0xf]
  %v153 = vld [vmem:[%s0 + $0xe4] sm:$0xff]
  %v154 = vld [vmem:[%s0 + $0xec] sm:$0xf]
  %v155 = vld [vmem:[%s0 + $0xf0] sm:$0xff]
  %v156 = vld [vmem:[%s0 + $0xf8] sm:$0xf]
  %v157 = vld [vmem:[%s0 + $0xfc] sm:$0xff]
  %v158 = vld [vmem:[%s0 + $0x104] sm:$0xf]
  %v159 = vld [vmem:[%s0 + $0x108] sm:$0xff]
  %v160 = vld [vmem:[%s0 + $0x110] sm:$0xf]
  %v161 = vld [vmem:[%s0 + $0x114] sm:$0xff]
  %v162 = vld [vmem:[%s0 + $0x11c] sm:$0xf]
  %v163 = vld [vmem:[%s0 + $0x120] sm:$0xff]
  %v164 = vld [vmem:[%s0 + $0x128] sm:$0xf]
  %v165 = vld [vmem:[%s0 + $0x12c] sm:$0xff]
  %v166 = vld [vmem:[%s0 + $0x134] sm:$0xf]
  %v167 = vld [vmem:[%s0 + $0x138] sm:$0xff]
  %v168 = vld [vmem:[%s0 + $0x140] sm:$0xf]
  %v169 = vld [vmem:[%s0 + $0x144] sm:$0xff]
  %v170 = vld [vmem:[%s0 + $0x14c] sm:$0xf]
  %v171 = vld [vmem:[%s0 + $0x150] sm:$0xff]
  %v172 = vld [vmem:[%s0 + $0x158] sm:$0xf]
  %v173 = vld [vmem:[%s0 + $0x15c] sm:$0xff]
  %v174 = vld [vmem:[%s0 + $0x164] sm:$0xf]
  %v175 = vld [vmem:[%s0 + $0x168] sm:$0xff]
  %v176 = vld [vmem:[%s0 + $0x170] sm:$0xf]
  %v177 = vld [vmem:[%s0 + $0x174] sm:$0xff]
  %v178 = vld [vmem:[%s0 + $0x17c] sm:$0xf]
  %v179 = vld [vmem:[%s0 + $0x180] sm:$0xff]
  %v180 = vld [vmem:[%s0 + $0x188] sm:$0xf]
  %v181 = vld [vmem:[%s0 + $0x18c] sm:$0xff]
  %v182 = vld [vmem:[%s0 + $0x194] sm:$0xf]
  %v183 = vld [vmem:[%s0 + $0x198] sm:$0xff]
  %v184 = vld [vmem:[%s0 + $0x1a0] sm:$0xf]
  %v185 = vld [vmem:[%s0 + $0x1a4] sm:$0xff]
  %v186 = vld [vmem:[%s0 + $0x1ac] sm:$0xf]
  %v187 = vld [vmem:[%s0 + $0x1b0] sm:$0xff]
  %v188 = vld [vmem:[%s0 + $0x1b8] sm:$0xf]
  %v189 = vld [vmem:[%s0 + $0x1bc] sm:$0xff]
  %v190 = vld [vmem:[%s0 + $0x1c4] sm:$0xf]
  %v191 = vld [vmem:[%s0 + $0x1c8] sm:$0xff]
  %v192 = vld [vmem:[%s0 + $0x1d0] sm:$0xf]
  %v193 = vld [vmem:[%s0 + $0x1d4] sm:$0xff]
  %v194 = vld [vmem:[%s0 + $0x1dc] sm:$0xf]
  %v195 = vld [vmem:[%s0 + $0x1e0] sm:$0xff]
  %v196 = vld [vmem:[%s0 + $0x1e8] sm:$0xf]
  %v197 = vld [vmem:[%s0 + $0x1ec] sm:$0xff]
  %v198 = vld [vmem:[%s0 + $0x1f4] sm:$0xf]
  %v199 = vld [vmem:[%s0 + $0x1f8] sm:$0xff]
  %v200 = vld [vmem:[%s0 + $0x200] sm:$0xf]
  %v201 = vld [vmem:[%s0 + $0x204] sm:$0xff]
  %v202 = vld [vmem:[%s0 + $0x20c] sm:$0xf]
  %v203 = vld [vmem:[%s0 + $0x210] sm:$0xff]
  %v204 = vld [vmem:[%s0 + $0x218] sm:$0xf]
  %v205 = vld [vmem:[%s0 + $0x21c] sm:$0xff]
  %v206 = vld [vmem:[%s0 + $0x224] sm:$0xf]
  %v207 = vld [vmem:[%s0 + $0x228] sm:$0xff]
  %v208 = vld [vmem:[%s0 + $0x230] sm:$0xf]
  %v209 = vld [vmem:[%s0 + $0x234] sm:$0xff]
  %v210 = vld [vmem:[%s0 + $0x23c] sm:$0xf]
  %v211 = vld [vmem:[%s1] sm:$0xf]
  %v212 = vld [vmem:[%s1 + $0x4] sm:$0xf]
  %v213 = vld [vmem:[%s1 + $0x8] sm:$0xf]
  %v214 = vld [vmem:[%s1 + $0xc] sm:$0xf]
  %v215 = vld [vmem:[%s1 + $0x10] sm:$0xf]
  %v216 = vld [vmem:[%s1 + $0x14] sm:$0xf]
  %v217 = vld [vmem:[%s1 + $0x18] sm:$0xf]
  %v218 = vld [vmem:[%s1 + $0x1c] sm:$0xf]
  %v219 = vld [vmem:[%s1 + $0x20] sm:$0xf]
  %v220 = vld [vmem:[%s1 + $0x24] sm:$0xf]
  %v221 = vld [vmem:[%s1 + $0x28] sm:$0xf]
  %v222 = vld [vmem:[%s1 + $0x2c] sm:$0xf]
  %v223 = vld [vmem:[%s1 + $0x30] sm:$0xf]
  %v224 = vld [vmem:[%s1 + $0x34] sm:$0xf]
  %v225 = vld [vmem:[%s1 + $0x38] sm:$0xf]
  %v226 = vld [vmem:[%s1 + $0x3c] sm:$0xf]
  %v227 = vld [vmem:[%s1 + $0x40] sm:$0xf]
  %v228 = vld [vmem:[%s1 + $0x44] sm:$0xf]
  %v229 = vld [vmem:[%s1 + $0x48] sm:$0xf]
  %v230 = vld [vmem:[%s1 + $0x4c] sm:$0xf]
  %v231 = vld [vmem:[%s1 + $0x50] sm:$0xf]
  %v232 = vld [vmem:[%s1 + $0x54] sm:$0xf]
  %v233 = vld [vmem:[%s1 + $0x58] sm:$0xf]
  %v234 = vld [vmem:[%s1 + $0x5c] sm:$0xf]
  %v235 = vld [vmem:[%s1 + $0x60] sm:$0xf]
  %v236 = vld [vmem:[%s1 + $0x64] sm:$0xf]
  %v237 = vld [vmem:[%s1 + $0x68] sm:$0xf]
  %v238 = vld [vmem:[%s1 + $0x6c] sm:$0xf]
  %v239 = vld [vmem:[%s1 + $0x70] sm:$0xf]
  %v240 = vld [vmem:[%s1 + $0x74] sm:$0xf]
  %v241 = vld [vmem:[%s1 + $0x78] sm:$0xf]
  %v242 = vld [vmem:[%s1 + $0x7c] sm:$0xf]
  %v243 = vld [vmem:[%s1 + $0x80] sm:$0xf]
  %v244 = vld [vmem:[%s1 + $0x84] sm:$0xf]
  %v245 = vld [vmem:[%s1 + $0x88] sm:$0xf]
  %v246 = vld [vmem:[%s1 + $0x8c] sm:$0xf]
  %v247 = vld [vmem:[%s1 + $0x90] sm:$0xf]
  %v248 = vld [vmem:[%s1 + $0x94] sm:$0xf]
  %v249 = vld [vmem:[%s1 + $0x98] sm:$0xf]
  %v250 = vld [vmem:[%s1 + $0x9c] sm:$0xf]
  %v251 = vld [vmem:[%s1 + $0xa0] sm:$0xf]
  %v252 = vld [vmem:[%s1 + $0xa4] sm:$0xf]
  %v253 = vld [vmem:[%s1 + $0xa8] sm:$0xf]
  %v254 = vld [vmem:[%s1 + $0xac] sm:$0xf]
  %v255 = vld [vmem:[%s1 + $0xb0] sm:$0xf]
  %v256 = vld [vmem:[%s1 + $0xb4] sm:$0xf]
  %v257 = vld [vmem:[%s1 + $0xb8] sm:$0xf]
  %v258 = vld [vmem:[%s1 + $0xbc] sm:$0xf]
  %v355 = vunpack.c.l.b16 %v115
  %v356 = vunpack.c.h.b16 %v115
  %v357 = vunpack.c.l.b16 %v116
  %v358 = vunpack.c.l.b16 %v117
  %v359 = vunpack.c.h.b16 %v117
  %v360 = vunpack.c.l.b16 %v118
  %v361 = vunpack.c.l.b16 %v119
  %v362 = vunpack.c.h.b16 %v119
  %v363 = vunpack.c.l.b16 %v120
  %v364 = vunpack.c.l.b16 %v121
  %v365 = vunpack.c.h.b16 %v121
  %v366 = vunpack.c.l.b16 %v122
  %v367 = vunpack.c.l.b16 %v123
  %v368 = vunpack.c.h.b16 %v123
  %v369 = vunpack.c.l.b16 %v124
  %v370 = vunpack.c.l.b16 %v125
  %v371 = vunpack.c.h.b16 %v125
  %v372 = vunpack.c.l.b16 %v126
  %v373 = vunpack.c.l.b16 %v127
  %v374 = vunpack.c.h.b16 %v127
  %v375 = vunpack.c.l.b16 %v128
  %v376 = vunpack.c.l.b16 %v129
  %v377 = vunpack.c.h.b16 %v129
  %v378 = vunpack.c.l.b16 %v130
  %v379 = vunpack.c.l.b16 %v131
  %v380 = vunpack.c.h.b16 %v131
  %v381 = vunpack.c.l.b16 %v132
  %v382 = vunpack.c.l.b16 %v133
  %v383 = vunpack.c.h.b16 %v133
  %v384 = vunpack.c.l.b16 %v134
  %v385 = vunpack.c.l.b16 %v135
  %v386 = vunpack.c.h.b16 %v135
  %v387 = vunpack.c.l.b16 %v136
  %v388 = vunpack.c.l.b16 %v137
  %v389 = vunpack.c.h.b16 %v137
  %v390 = vunpack.c.l.b16 %v138
  %v391 = vunpack.c.l.b16 %v139
  %v392 = vunpack.c.h.b16 %v139
  %v393 = vunpack.c.l.b16 %v140
  %v394 = vunpack.c.l.b16 %v141
  %v395 = vunpack.c.h.b16 %v141
  %v396 = vunpack.c.l.b16 %v142
  %v397 = vunpack.c.l.b16 %v143
  %v398 = vunpack.c.h.b16 %v143
  %v399 = vunpack.c.l.b16 %v144
  %v400 = vunpack.c.l.b16 %v145
  %v401 = vunpack.c.h.b16 %v145
  %v402 = vunpack.c.l.b16 %v146
  %v403 = vunpack.c.l.b16 %v147
  %v404 = vunpack.c.h.b16 %v147
  %v405 = vunpack.c.l.b16 %v148
  %v406 = vunpack.c.l.b16 %v149
  %v407 = vunpack.c.h.b16 %v149
  %v408 = vunpack.c.l.b16 %v150
  %v409 = vunpack.c.l.b16 %v151
  %v410 = vunpack.c.h.b16 %v151
  %v411 = vunpack.c.l.b16 %v152
  %v412 = vunpack.c.l.b16 %v153
  %v413 = vunpack.c.h.b16 %v153
  %v414 = vunpack.c.l.b16 %v154
  %v415 = vunpack.c.l.b16 %v155
  %v416 = vunpack.c.h.b16 %v155
  %v417 = vunpack.c.l.b16 %v156
  %v418 = vunpack.c.l.b16 %v157
  %v419 = vunpack.c.h.b16 %v157
  %v420 = vunpack.c.l.b16 %v158
  %v421 = vunpack.c.l.b16 %v159
  %v422 = vunpack.c.h.b16 %v159
  %v423 = vunpack.c.l.b16 %v160
  %v424 = vunpack.c.l.b16 %v161
  %v425 = vunpack.c.h.b16 %v161
  %v426 = vunpack.c.l.b16 %v162
  %v427 = vunpack.c.l.b16 %v163
  %v428 = vunpack.c.h.b16 %v163
  %v429 = vunpack.c.l.b16 %v164
  %v430 = vunpack.c.l.b16 %v165
  %v431 = vunpack.c.h.b16 %v165
  %v432 = vunpack.c.l.b16 %v166
  %v433 = vunpack.c.l.b16 %v167
  %v434 = vunpack.c.h.b16 %v167
  %v435 = vunpack.c.l.b16 %v168
  %v436 = vunpack.c.l.b16 %v169
  %v437 = vunpack.c.h.b16 %v169
  %v438 = vunpack.c.l.b16 %v170
  %v439 = vunpack.c.l.b16 %v171
  %v440 = vunpack.c.h.b16 %v171
  %v441 = vunpack.c.l.b16 %v172
  %v442 = vunpack.c.l.b16 %v173
  %v443 = vunpack.c.h.b16 %v173
  %v444 = vunpack.c.l.b16 %v174
  %v445 = vunpack.c.l.b16 %v175
  %v446 = vunpack.c.h.b16 %v175
  %v447 = vunpack.c.l.b16 %v176
  %v448 = vunpack.c.l.b16 %v177
  %v449 = vunpack.c.h.b16 %v177
  %v450 = vunpack.c.l.b16 %v178
  %v451 = vunpack.c.l.b16 %v179
  %v452 = vunpack.c.h.b16 %v179
  %v453 = vunpack.c.l.b16 %v180
  %v454 = vunpack.c.l.b16 %v181
  %v455 = vunpack.c.h.b16 %v181
  %v456 = vunpack.c.l.b16 %v182
  %v457 = vunpack.c.l.b16 %v183
  %v458 = vunpack.c.h.b16 %v183
  %v459 = vunpack.c.l.b16 %v184
  %v460 = vunpack.c.l.b16 %v185
  %v461 = vunpack.c.h.b16 %v185
  %v462 = vunpack.c.l.b16 %v186
  %v463 = vunpack.c.l.b16 %v187
  %v464 = vunpack.c.h.b16 %v187
  %v465 = vunpack.c.l.b16 %v188
  %v466 = vunpack.c.l.b16 %v189
  %v467 = vunpack.c.h.b16 %v189
  %v468 = vunpack.c.l.b16 %v190
  %v469 = vunpack.c.l.b16 %v191
  %v470 = vunpack.c.h.b16 %v191
  %v471 = vunpack.c.l.b16 %v192
  %v472 = vunpack.c.l.b16 %v193
  %v473 = vunpack.c.h.b16 %v193
  %v474 = vunpack.c.l.b16 %v194
  %v475 = vunpack.c.l.b16 %v195
  %v476 = vunpack.c.h.b16 %v195
  %v477 = vunpack.c.l.b16 %v196
  %v478 = vunpack.c.l.b16 %v197
  %v479 = vunpack.c.h.b16 %v197
  %v480 = vunpack.c.l.b16 %v198
  %v481 = vunpack.c.l.b16 %v199
  %v482 = vunpack.c.h.b16 %v199
  %v483 = vunpack.c.l.b16 %v200
  %v484 = vunpack.c.l.b16 %v201
  %v485 = vunpack.c.h.b16 %v201
  %v486 = vunpack.c.l.b16 %v202
  %v487 = vunpack.c.l.b16 %v203
  %v488 = vunpack.c.h.b16 %v203
  %v489 = vunpack.c.l.b16 %v204
  %v490 = vunpack.c.l.b16 %v205
  %v491 = vunpack.c.h.b16 %v205
  %v492 = vunpack.c.l.b16 %v206
  %v493 = vunpack.c.l.b16 %v207
  %v494 = vunpack.c.h.b16 %v207
  %v495 = vunpack.c.l.b16 %v208
  %v496 = vunpack.c.l.b16 %v209
  %v497 = vunpack.c.h.b16 %v209
  %v498 = vunpack.c.l.b16 %v210
  %v499 = vpack.c.b16 %v358, %v355
  %v500 = vpack.c.b16 %v359, %v356
  %v501 = vpack.c.b16 %v360, %v357
  %v502 = vpack.c.b16 %v364, %v361
  %v503 = vpack.c.b16 %v365, %v362
  %v504 = vpack.c.b16 %v366, %v363
  %v505 = vpack.c.b16 %v370, %v367
  %v506 = vpack.c.b16 %v371, %v368
  %v507 = vpack.c.b16 %v372, %v369
  %v508 = vpack.c.b16 %v376, %v373
  %v509 = vpack.c.b16 %v377, %v374
  %v510 = vpack.c.b16 %v378, %v375
  %v511 = vpack.c.b16 %v382, %v379
  %v512 = vpack.c.b16 %v383, %v380
  %v513 = vpack.c.b16 %v384, %v381
  %v514 = vpack.c.b16 %v388, %v385
  %v515 = vpack.c.b16 %v389, %v386
  %v516 = vpack.c.b16 %v390, %v387
  %v517 = vpack.c.b16 %v394, %v391
  %v518 = vpack.c.b16 %v395, %v392
  %v519 = vpack.c.b16 %v396, %v393
  %v520 = vpack.c.b16 %v400, %v397
  %v521 = vpack.c.b16 %v401, %v398
  %v522 = vpack.c.b16 %v402, %v399
  %v523 = vpack.c.b16 %v406, %v403
  %v524 = vpack.c.b16 %v407, %v404
  %v525 = vpack.c.b16 %v408, %v405
  %v526 = vpack.c.b16 %v412, %v409
  %v527 = vpack.c.b16 %v413, %v410
  %v528 = vpack.c.b16 %v414, %v411
  %v529 = vpack.c.b16 %v418, %v415
  %v530 = vpack.c.b16 %v419, %v416
  %v531 = vpack.c.b16 %v420, %v417
  %v532 = vpack.c.b16 %v424, %v421
  %v533 = vpack.c.b16 %v425, %v422
  %v534 = vpack.c.b16 %v426, %v423
  %v535 = vpack.c.b16 %v430, %v427
  %v536 = vpack.c.b16 %v431, %v428
  %v537 = vpack.c.b16 %v432, %v429
  %v538 = vpack.c.b16 %v436, %v433
  %v539 = vpack.c.b16 %v437, %v434
  %v540 = vpack.c.b16 %v438, %v435
  %v541 = vpack.c.b16 %v442, %v439
  %v542 = vpack.c.b16 %v443, %v440
  %v543 = vpack.c.b16 %v444, %v441
  %v544 = vpack.c.b16 %v448, %v445
  %v545 = vpack.c.b16 %v449, %v446
  %v546 = vpack.c.b16 %v450, %v447
  %v547 = vpack.c.b16 %v454, %v451
  %v548 = vpack.c.b16 %v455, %v452
  %v549 = vpack.c.b16 %v456, %v453
  %v550 = vpack.c.b16 %v460, %v457
  %v551 = vpack.c.b16 %v461, %v458
  %v552 = vpack.c.b16 %v462, %v459
  %v553 = vpack.c.b16 %v466, %v463
  %v554 = vpack.c.b16 %v467, %v464
  %v555 = vpack.c.b16 %v468, %v465
  %v556 = vpack.c.b16 %v472, %v469
  %v557 = vpack.c.b16 %v473, %v470
  %v558 = vpack.c.b16 %v474, %v471
  %v559 = vpack.c.b16 %v478, %v475
  %v560 = vpack.c.b16 %v479, %v476
  %v561 = vpack.c.b16 %v480, %v477
  %v562 = vpack.c.b16 %v484, %v481
  %v563 = vpack.c.b16 %v485, %v482
  %v564 = vpack.c.b16 %v486, %v483
  %v565 = vpack.c.b16 %v490, %v487
  %v566 = vpack.c.b16 %v491, %v488
  %v567 = vpack.c.b16 %v492, %v489
  %v568 = vpack.c.b16 %v496, %v493
  %v569 = vpack.c.b16 %v497, %v494
  %v570 = vpack.c.b16 %v498, %v495
  %v691 = vunpack.c.l.b16 %v211
  %v692 = vunpack.c.l.b16 %v212
  %v693 = vunpack.c.l.b16 %v213
  %v694 = vunpack.c.l.b16 %v214
  %v695 = vunpack.c.l.b16 %v215
  %v696 = vunpack.c.l.b16 %v216
  %v697 = vunpack.c.l.b16 %v217
  %v698 = vunpack.c.l.b16 %v218
  %v699 = vunpack.c.l.b16 %v219
  %v700 = vunpack.c.l.b16 %v220
  %v701 = vunpack.c.l.b16 %v221
  %v702 = vunpack.c.l.b16 %v222
  %v703 = vunpack.c.l.b16 %v223
  %v704 = vunpack.c.l.b16 %v224
  %v705 = vunpack.c.l.b16 %v225
  %v706 = vunpack.c.l.b16 %v226
  %v707 = vunpack.c.l.b16 %v227
  %v708 = vunpack.c.l.b16 %v228
  %v709 = vunpack.c.l.b16 %v229
  %v710 = vunpack.c.l.b16 %v230
  %v711 = vunpack.c.l.b16 %v231
  %v712 = vunpack.c.l.b16 %v232
  %v713 = vunpack.c.l.b16 %v233
  %v714 = vunpack.c.l.b16 %v234
  %v715 = vunpack.c.l.b16 %v235
  %v716 = vunpack.c.l.b16 %v236
  %v717 = vunpack.c.l.b16 %v237
  %v718 = vunpack.c.l.b16 %v238
  %v719 = vunpack.c.l.b16 %v239
  %v720 = vunpack.c.l.b16 %v240
  %v721 = vunpack.c.l.b16 %v241
  %v722 = vunpack.c.l.b16 %v242
  %v723 = vunpack.c.l.b16 %v243
  %v724 = vunpack.c.l.b16 %v244
  %v725 = vunpack.c.l.b16 %v245
  %v726 = vunpack.c.l.b16 %v246
  %v727 = vunpack.c.l.b16 %v247
  %v728 = vunpack.c.l.b16 %v248
  %v729 = vunpack.c.l.b16 %v249
  %v730 = vunpack.c.l.b16 %v250
  %v731 = vunpack.c.l.b16 %v251
  %v732 = vunpack.c.l.b16 %v252
  %v733 = vunpack.c.l.b16 %v253
  %v734 = vunpack.c.l.b16 %v254
  %v735 = vunpack.c.l.b16 %v255
  %v736 = vunpack.c.l.b16 %v256
  %v737 = vunpack.c.l.b16 %v257
  %v738 = vunpack.c.l.b16 %v258
  %v739 = vpack.c.b16 %v692, %v691
  %v740 = vpack.c.b16 %v694, %v693
  %v741 = vpack.c.b16 %v696, %v695
  %v742 = vpack.c.b16 %v698, %v697
  %v743 = vpack.c.b16 %v700, %v699
  %v744 = vpack.c.b16 %v702, %v701
  %v745 = vpack.c.b16 %v704, %v703
  %v746 = vpack.c.b16 %v706, %v705
  %v747 = vpack.c.b16 %v708, %v707
  %v748 = vpack.c.b16 %v710, %v709
  %v749 = vpack.c.b16 %v712, %v711
  %v750 = vpack.c.b16 %v714, %v713
  %v751 = vpack.c.b16 %v716, %v715
  %v752 = vpack.c.b16 %v718, %v717
  %v753 = vpack.c.b16 %v720, %v719
  %v754 = vpack.c.b16 %v722, %v721
  %v755 = vpack.c.b16 %v724, %v723
  %v756 = vpack.c.b16 %v726, %v725
  %v757 = vpack.c.b16 %v728, %v727
  %v758 = vpack.c.b16 %v730, %v729
  %v759 = vpack.c.b16 %v732, %v731
  %v760 = vpack.c.b16 %v734, %v733
  %v761 = vpack.c.b16 %v736, %v735
  %v762 = vpack.c.b16 %v738, %v737
  %787 = vmatprep.subr.bf16.mxu0 0
  %788 = vmatpush1.bf16.msra.mxu0 %v739
  %789 = vmatprep.subr.bf16.mxu0 0
  %790 = vmatpush1.bf16.msra.mxu0 %v740
  %791 = vmatprep.subr.bf16.mxu0 0
  %792 = vmatpush1.bf16.msra.mxu0 %v741
  %793 = vmatprep.subr.bf16.mxu0 0
  %794 = vmatpush1.bf16.msra.mxu0 %v742
  %795 = vmatprep.subr.bf16.mxu0 0
  %796 = vmatpush1.bf16.msra.mxu0 %v743
  %797 = vmatprep.subr.bf16.mxu0 0
  %798 = vmatpush1.bf16.msra.mxu0 %v744
  %799 = vmatprep.subr.bf16.mxu0 0
  %800 = vmatpush1.bf16.msra.mxu0 %v745
  %801 = vmatprep.subr.bf16.mxu0 0
  %802 = vmatpush1.bf16.msra.mxu0 %v746
  %803 = vmatprep.subr.bf16.mxu0 0
  %804 = vmatpush1.bf16.msra.mxu0 %v747
  %805 = vmatprep.subr.bf16.mxu0 0
  %806 = vmatpush1.bf16.msra.mxu0 %v748
  %807 = vmatprep.subr.bf16.mxu0 0
  %808 = vmatpush1.bf16.msra.mxu0 %v749
  %809 = vmatprep.subr.bf16.mxu0 0
  %810 = vmatpush1.bf16.msra.mxu0 %v750
  %811 = vmatprep.subr.bf16.mxu0 0
  %812 = vmatpush1.bf16.msra.mxu0 %v751
  %813 = vmatprep.subr.bf16.mxu0 0
  %814 = vmatpush1.bf16.msra.mxu0 %v752
  %815 = vmatprep.subr.bf16.mxu0 0
  %816 = vmatpush1.bf16.msra.mxu0 %v753
  %817 = vmatprep.subr.bf16.mxu0 0
  %818 = vmatpush1.bf16.msra.mxu0 %v754
  %819 = vmatprep.mubr.bf16.mxu0 %v500
  %820 = vmatmul.mubr.bf16.gmra.mrb[0].mxu0 %v499
  %v821 = vpop.f32.mrb[0].mxu0
  %v822 = vadd.f32 0.0, %v821
  %v823 = vpop.f32.mrb[0].mxu0
  %v824 = vpop.f32.mrb[0].mxu0
  %v825 = vadd.f32 0.0, %v824
  %v826 = vpop.f32.mrb[0].mxu0
  %827 = vmatprep.mubr.bf16.mxu0 %v503
  %828 = vmatmul.mubr.bf16.gmra.mrb[0].mxu0 %v502
  %v829 = vpop.f32.mrb[0].mxu0
  %v830 = vadd.f32 0.0, %v829
  %v831 = vpop.f32.mrb[0].mxu0
  %v832 = vpop.f32.mrb[0].mxu0
  %v833 = vadd.f32 0.0, %v832
  %v834 = vpop.f32.mrb[0].mxu0
  %835 = vmatprep.mubr.bf16.mxu0 %v506
  %836 = vmatmul.mubr.bf16.gmra.mrb[0].mxu0 %v505
  %v837 = vpop.f32.mrb[0].mxu0
  %v838 = vadd.f32 0.0, %v837
  %v839 = vpop.f32.mrb[0].mxu0
  %v840 = vpop.f32.mrb[0].mxu0
  %v841 = vadd.f32 0.0, %v840
  %v842 = vpop.f32.mrb[0].mxu0
  %843 = vmatprep.mubr.bf16.mxu0 %v509
  %844 = vmatmul.mubr.bf16.gmra.mrb[0].mxu0 %v508
  %v845 = vpop.f32.mrb[0].mxu0
  %v846 = vadd.f32 0.0, %v845
  %v847 = vpop.f32.mrb[0].mxu0
  %v848 = vpop.f32.mrb[0].mxu0
  %v849 = vadd.f32 0.0, %v848
  %v850 = vpop.f32.mrb[0].mxu0
  %851 = vmatprep.mubr.bf16.mxu0 %v512
  %852 = vmatmul.mubr.bf16.gmra.mrb[0].mxu0 %v511
  %v853 = vpop.f32.mrb[0].mxu0
  %v854 = vadd.f32 0.0, %v853
  %v855 = vpop.f32.mrb[0].mxu0
  %v856 = vpop.f32.mrb[0].mxu0
  %v857 = vadd.f32 0.0, %v856
  %v858 = vpop.f32.mrb[0].mxu0
  %859 = vmatprep.mubr.bf16.mxu0 %v515
  %860 = vmatmul.mubr.bf16.gmra.mrb[0].mxu0 %v514
  %v861 = vpop.f32.mrb[0].mxu0
  %v862 = vadd.f32 0.0, %v861
  %v863 = vpop.f32.mrb[0].mxu0
  %v864 = vpop.f32.mrb[0].mxu0
  %v865 = vadd.f32 0.0, %v864
  %v866 = vpop.f32.mrb[0].mxu0
  %867 = vmatprep.mubr.bf16.mxu0 %v518
  %868 = vmatmul.mubr.bf16.gmra.mrb[0].mxu0 %v517
  %v869 = vpop.f32.mrb[0].mxu0
  %v870 = vadd.f32 0.0, %v869
  %v871 = vpop.f32.mrb[0].mxu0
  %v872 = vpop.f32.mrb[0].mxu0
  %v873 = vadd.f32 0.0, %v872
  %v874 = vpop.f32.mrb[0].mxu0
  %875 = vmatprep.mubr.bf16.mxu0 %v521
  %876 = vmatmul.mubr.bf16.gmra.mrb[0].mxu0 %v520
  %v877 = vpop.f32.mrb[0].mxu0
  %v878 = vadd.f32 0.0, %v877
  %v879 = vpop.f32.mrb[0].mxu0
  %v880 = vpop.f32.mrb[0].mxu0
  %v881 = vadd.f32 0.0, %v880
  %v882 = vpop.f32.mrb[0].mxu0
  %883 = vmatprep.mubr.bf16.mxu0 %v524
  %884 = vmatmul.mubr.bf16.gmra.mrb[0].mxu0 %v523
  %v885 = vpop.f32.mrb[0].mxu0
  %v886 = vadd.f32 0.0, %v885
  %v887 = vpop.f32.mrb[0].mxu0
  %v888 = vpop.f32.mrb[0].mxu0
  %v889 = vadd.f32 0.0, %v888
  %v890 = vpop.f32.mrb[0].mxu0
  %891 = vmatprep.mubr.bf16.mxu0 %v527
  %892 = vmatmul.mubr.bf16.gmra.mrb[0].mxu0 %v526
  %v893 = vpop.f32.mrb[0].mxu0
  %v894 = vadd.f32 0.0, %v893
  %v895 = vpop.f32.mrb[0].mxu0
  %v896 = vpop.f32.mrb[0].mxu0
  %v897 = vadd.f32 0.0, %v896
  %v898 = vpop.f32.mrb[0].mxu0
  %899 = vmatprep.mubr.bf16.mxu0 %v530
  %900 = vmatmul.mubr.bf16.gmra.mrb[0].mxu0 %v529
  %v901 = vpop.f32.mrb[0].mxu0
  %v902 = vadd.f32 0.0, %v901
  %v903 = vpop.f32.mrb[0].mxu0
  %v904 = vpop.f32.mrb[0].mxu0
  %v905 = vadd.f32 0.0, %v904
  %v906 = vpop.f32.mrb[0].mxu0
  %907 = vmatprep.mubr.bf16.mxu0 %v533
  %908 = vmatmul.mubr.bf16.gmra.mrb[0].mxu0 %v532
  %v909 = vpop.f32.mrb[0].mxu0
  %v910 = vadd.f32 0.0, %v909
  %v911 = vpop.f32.mrb[0].mxu0
  %v912 = vpop.f32.mrb[0].mxu0
  %v913 = vadd.f32 0.0, %v912
  %v914 = vpop.f32.mrb[0].mxu0
  %915 = vmatprep.mubr.bf16.mxu0 %v536
  %916 = vmatmul.mubr.bf16.gmra.mrb[0].mxu0 %v535
  %v917 = vpop.f32.mrb[0].mxu0
  %v918 = vadd.f32 0.0, %v917
  %v919 = vpop.f32.mrb[0].mxu0
  %v920 = vpop.f32.mrb[0].mxu0
  %v921 = vadd.f32 0.0, %v920
  %v922 = vpop.f32.mrb[0].mxu0
  %923 = vmatprep.mubr.bf16.mxu0 %v539
  %924 = vmatmul.mubr.bf16.gmra.mrb[0].mxu0 %v538
  %v925 = vpop.f32.mrb[0].mxu0
  %v926 = vadd.f32 0.0, %v925
  %v927 = vpop.f32.mrb[0].mxu0
  %v928 = vpop.f32.mrb[0].mxu0
  %v929 = vadd.f32 0.0, %v928
  %v930 = vpop.f32.mrb[0].mxu0
  %931 = vmatprep.mubr.bf16.mxu0 %v542
  %932 = vmatmul.mubr.bf16.gmra.mrb[0].mxu0 %v541
  %v933 = vpop.f32.mrb[0].mxu0
  %v934 = vadd.f32 0.0, %v933
  %v935 = vpop.f32.mrb[0].mxu0
  %v936 = vpop.f32.mrb[0].mxu0
  %v937 = vadd.f32 0.0, %v936
  %v938 = vpop.f32.mrb[0].mxu0
  %939 = vmatprep.mubr.bf16.mxu0 %v545
  %940 = vmatmul.mubr.bf16.gmra.mrb[0].mxu0 %v544
  %v941 = vpop.f32.mrb[0].mxu0
  %v942 = vadd.f32 0.0, %v941
  %v943 = vpop.f32.mrb[0].mxu0
  %v944 = vpop.f32.mrb[0].mxu0
  %v945 = vadd.f32 0.0, %v944
  %v946 = vpop.f32.mrb[0].mxu0
  %947 = vmatprep.mubr.bf16.mxu0 %v548
  %948 = vmatmul.mubr.bf16.gmra.mrb[0].mxu0 %v547
  %v949 = vpop.f32.mrb[0].mxu0
  %v950 = vadd.f32 0.0, %v949
  %v951 = vpop.f32.mrb[0].mxu0
  %v952 = vpop.f32.mrb[0].mxu0
  %v953 = vadd.f32 0.0, %v952
  %v954 = vpop.f32.mrb[0].mxu0
  %955 = vmatprep.mubr.bf16.mxu0 %v551
  %956 = vmatmul.mubr.bf16.gmra.mrb[0].mxu0 %v550
  %v957 = vpop.f32.mrb[0].mxu0
  %v958 = vadd.f32 0.0, %v957
  %v959 = vpop.f32.mrb[0].mxu0
  %v960 = vpop.f32.mrb[0].mxu0
  %v961 = vadd.f32 0.0, %v960
  %v962 = vpop.f32.mrb[0].mxu0
  %963 = vmatprep.mubr.bf16.mxu0 %v554
  %964 = vmatmul.mubr.bf16.gmra.mrb[0].mxu0 %v553
  %v965 = vpop.f32.mrb[0].mxu0
  %v966 = vadd.f32 0.0, %v965
  %v967 = vpop.f32.mrb[0].mxu0
  %v968 = vpop.f32.mrb[0].mxu0
  %v969 = vadd.f32 0.0, %v968
  %v970 = vpop.f32.mrb[0].mxu0
  %971 = vmatprep.mubr.bf16.mxu0 %v557
  %972 = vmatmul.mubr.bf16.gmra.mrb[0].mxu0 %v556
  %v973 = vpop.f32.mrb[0].mxu0
  %v974 = vadd.f32 0.0, %v973
  %v975 = vpop.f32.mrb[0].mxu0
  %v976 = vpop.f32.mrb[0].mxu0
  %v977 = vadd.f32 0.0, %v976
  %v978 = vpop.f32.mrb[0].mxu0
  %979 = vmatprep.mubr.bf16.mxu0 %v560
  %980 = vmatmul.mubr.bf16.gmra.mrb[0].mxu0 %v559
  %v981 = vpop.f32.mrb[0].mxu0
  %v982 = vadd.f32 0.0, %v981
  %v983 = vpop.f32.mrb[0].mxu0
  %v984 = vpop.f32.mrb[0].mxu0
  %v985 = vadd.f32 0.0, %v984
  %v986 = vpop.f32.mrb[0].mxu0
  %987 = vmatprep.mubr.bf16.mxu0 %v563
  %988 = vmatmul.mubr.bf16.gmra.mrb[0].mxu0 %v562
  %v989 = vpop.f32.mrb[0].mxu0
  %v990 = vadd.f32 0.0, %v989
  %v991 = vpop.f32.mrb[0].mxu0
  %v992 = vpop.f32.mrb[0].mxu0
  %v993 = vadd.f32 0.0, %v992
  %v994 = vpop.f32.mrb[0].mxu0
  %995 = vmatprep.mubr.bf16.mxu0 %v566
  %996 = vmatmul.mubr.bf16.gmra.mrb[0].mxu0 %v565
  %v997 = vpop.f32.mrb[0].mxu0
  %v998 = vadd.f32 0.0, %v997
  %v999 = vpop.f32.mrb[0].mxu0
  %v1000 = vpop.f32.mrb[0].mxu0
  %v1001 = vadd.f32 0.0, %v1000
  %v1002 = vpop.f32.mrb[0].mxu0
  %1003 = vmatprep.mubr.bf16.mxu0 %v569
  %1004 = vmatmul.mubr.bf16.gmra.mrb[0].mxu0 %v568
  %v1005 = vpop.f32.mrb[0].mxu0
  %v1006 = vadd.f32 0.0, %v1005
  %v1007 = vpop.f32.mrb[0].mxu0
  %v1008 = vpop.f32.mrb[0].mxu0
  %v1009 = vadd.f32 0.0, %v1008
  %v1010 = vpop.f32.mrb[0].mxu0
  %1011 = vdwg.mxu0
  %1012 = vmatprep.subr.bf16.mxu0 0
  %1013 = vmatpush1.bf16.msra.mxu0 %v755
  %1014 = vmatprep.subr.bf16.mxu0 0
  %1015 = vmatpush1.bf16.msra.mxu0 %v756
  %1016 = vmatprep.subr.bf16.mxu0 0
  %1017 = vmatpush1.bf16.msra.mxu0 %v757
  %1018 = vmatprep.subr.bf16.mxu0 0
  %1019 = vmatpush1.bf16.msra.mxu0 %v758
  %1020 = vmatprep.subr.bf16.mxu0 0
  %1021 = vmatpush1.bf16.msra.mxu0 %v759
  %1022 = vmatprep.subr.bf16.mxu0 0
  %1023 = vmatpush1.bf16.msra.mxu0 %v760
  %1024 = vmatprep.subr.bf16.mxu0 0
  %1025 = vmatpush1.bf16.msra.mxu0 %v761
  %1026 = vmatprep.subr.bf16.mxu0 0
  %1027 = vmatpush1.bf16.msra.mxu0 %v762
  %1028 = vmatprep.subr.bf16.mxu0 0
  %1029 = vmatpush1.bf16.msra.mxu0 0
  %1030 = vmatprep.subr.bf16.mxu0 0
  %1031 = vmatpush1.bf16.msra.mxu0 0
  %1032 = vmatprep.subr.bf16.mxu0 0
  %1033 = vmatpush1.bf16.msra.mxu0 0
  %1034 = vmatprep.subr.bf16.mxu0 0
  %1035 = vmatpush1.bf16.msra.mxu0 0
  %1036 = vmatprep.subr.bf16.mxu0 0
  %1037 = vmatpush1.bf16.msra.mxu0 0
  %1038 = vmatprep.subr.bf16.mxu0 0
  %1039 = vmatpush1.bf16.msra.mxu0 0
  %1040 = vmatprep.subr.bf16.mxu0 0
  %1041 = vmatpush1.bf16.msra.mxu0 0
  %1042 = vmatprep.subr.bf16.mxu0 0
  %1043 = vmatpush1.bf16.msra.mxu0 0
  %1044 = vmatprep.mubr.bf16.mxu0 0
  %1045 = vmatmul.mubr.bf16.gmra.mrb[0].mxu0 %v501
  %v1046 = vpop.f32.mrb[0].mxu0
  %v1047 = vadd.f32 %v822, %v1046
  %v1048 = vpop.f32.mrb[0].mxu0
  %v1049 = vpop.f32.mrb[0].mxu0
  %v1050 = vadd.f32 %v825, %v1049
  %v1051 = vpop.f32.mrb[0].mxu0
  %1052 = vmatprep.mubr.bf16.mxu0 0
  %1053 = vmatmul.mubr.bf16.gmra.mrb[0].mxu0 %v504
  %v1054 = vpop.f32.mrb[0].mxu0
  %v1055 = vadd.f32 %v830, %v1054
  %v1056 = vpop.f32.mrb[0].mxu0
  %v1057 = vpop.f32.mrb[0].mxu0
  %v1058 = vadd.f32 %v833, %v1057
  %v1059 = vpop.f32.mrb[0].mxu0
  %1060 = vmatprep.mubr.bf16.mxu0 0
  %1061 = vmatmul.mubr.bf16.gmra.mrb[0].mxu0 %v507
  %v1062 = vpop.f32.mrb[0].mxu0
  %v1063 = vadd.f32 %v838, %v1062
  %v1064 = vpop.f32.mrb[0].mxu0
  %v1065 = vpop.f32.mrb[0].mxu0
  %v1066 = vadd.f32 %v841, %v1065
  %v1067 = vpop.f32.mrb[0].mxu0
  %1068 = vmatprep.mubr.bf16.mxu0 0
  %1069 = vmatmul.mubr.bf16.gmra.mrb[0].mxu0 %v510
  %v1070 = vpop.f32.mrb[0].mxu0
  %v1071 = vadd.f32 %v846, %v1070
  %v1072 = vpop.f32.mrb[0].mxu0
  %v1073 = vpop.f32.mrb[0].mxu0
  %v1074 = vadd.f32 %v849, %v1073
  %v1075 = vpop.f32.mrb[0].mxu0
  %1076 = vmatprep.mubr.bf16.mxu0 0
  %1077 = vmatmul.mubr.bf16.gmra.mrb[0].mxu0 %v513
  %v1078 = vpop.f32.mrb[0].mxu0
  %v1079 = vadd.f32 %v854, %v1078
  %v1080 = vpop.f32.mrb[0].mxu0
  %v1081 = vpop.f32.mrb[0].mxu0
  %v1082 = vadd.f32 %v857, %v1081
  %v1083 = vpop.f32.mrb[0].mxu0
  %1084 = vmatprep.mubr.bf16.mxu0 0
  %1085 = vmatmul.mubr.bf16.gmra.mrb[0].mxu0 %v516
  %v1086 = vpop.f32.mrb[0].mxu0
  %v1087 = vadd.f32 %v862, %v1086
  %v1088 = vpop.f32.mrb[0].mxu0
  %v1089 = vpop.f32.mrb[0].mxu0
  %v1090 = vadd.f32 %v865, %v1089
  %v1091 = vpop.f32.mrb[0].mxu0
  %1092 = vmatprep.mubr.bf16.mxu0 0
  %1093 = vmatmul.mubr.bf16.gmra.mrb[0].mxu0 %v519
  %v1094 = vpop.f32.mrb[0].mxu0
  %v1095 = vadd.f32 %v870, %v1094
  %v1096 = vpop.f32.mrb[0].mxu0
  %v1097 = vpop.f32.mrb[0].mxu0
  %v1098 = vadd.f32 %v873, %v1097
  %v1099 = vpop.f32.mrb[0].mxu0
  %1100 = vmatprep.mubr.bf16.mxu0 0
  %1101 = vmatmul.mubr.bf16.gmra.mrb[0].mxu0 %v522
  %v1102 = vpop.f32.mrb[0].mxu0
  %v1103 = vadd.f32 %v878, %v1102
  %v1104 = vpop.f32.mrb[0].mxu0
  %v1105 = vpop.f32.mrb[0].mxu0
  %v1106 = vadd.f32 %v881, %v1105
  %v1107 = vpop.f32.mrb[0].mxu0
  %1108 = vmatprep.mubr.bf16.mxu0 0
  %1109 = vmatmul.mubr.bf16.gmra.mrb[0].mxu0 %v525
  %v1110 = vpop.f32.mrb[0].mxu0
  %v1111 = vadd.f32 %v886, %v1110
  %v1112 = vpop.f32.mrb[0].mxu0
  %v1113 = vpop.f32.mrb[0].mxu0
  %v1114 = vadd.f32 %v889, %v1113
  %v1115 = vpop.f32.mrb[0].mxu0
  %1116 = vmatprep.mubr.bf16.mxu0 0
  %1117 = vmatmul.mubr.bf16.gmra.mrb[0].mxu0 %v528
  %v1118 = vpop.f32.mrb[0].mxu0
  %v1119 = vadd.f32 %v894, %v1118
  %v1120 = vpop.f32.mrb[0].mxu0
  %v1121 = vpop.f32.mrb[0].mxu0
  %v1122 = vadd.f32 %v897, %v1121
  %v1123 = vpop.f32.mrb[0].mxu0
  %1124 = vmatprep.mubr.bf16.mxu0 0
  %1125 = vmatmul.mubr.bf16.gmra.mrb[0].mxu0 %v531
  %v1126 = vpop.f32.mrb[0].mxu0
  %v1127 = vadd.f32 %v902, %v1126
  %v1128 = vpop.f32.mrb[0].mxu0
  %v1129 = vpop.f32.mrb[0].mxu0
  %v1130 = vadd.f32 %v905, %v1129
  %v1131 = vpop.f32.mrb[0].mxu0
  %1132 = vmatprep.mubr.bf16.mxu0 0
  %1133 = vmatmul.mubr.bf16.gmra.mrb[0].mxu0 %v534
  %v1134 = vpop.f32.mrb[0].mxu0
  %v1135 = vadd.f32 %v910, %v1134
  %v1136 = vpop.f32.mrb[0].mxu0
  %v1137 = vpop.f32.mrb[0].mxu0
  %v1138 = vadd.f32 %v913, %v1137
  %v1139 = vpop.f32.mrb[0].mxu0
  %1140 = vmatprep.mubr.bf16.mxu0 0
  %1141 = vmatmul.mubr.bf16.gmra.mrb[0].mxu0 %v537
  %v1142 = vpop.f32.mrb[0].mxu0
  %v1143 = vadd.f32 %v918, %v1142
  %v1144 = vpop.f32.mrb[0].mxu0
  %v1145 = vpop.f32.mrb[0].mxu0
  %v1146 = vadd.f32 %v921, %v1145
  %v1147 = vpop.f32.mrb[0].mxu0
  %1148 = vmatprep.mubr.bf16.mxu0 0
  %1149 = vmatmul.mubr.bf16.gmra.mrb[0].mxu0 %v540
  %v1150 = vpop.f32.mrb[0].mxu0
  %v1151 = vadd.f32 %v926, %v1150
  %v1152 = vpop.f32.mrb[0].mxu0
  %v1153 = vpop.f32.mrb[0].mxu0
  %v1154 = vadd.f32 %v929, %v1153
  %v1155 = vpop.f32.mrb[0].mxu0
  %1156 = vmatprep.mubr.bf16.mxu0 0
  %1157 = vmatmul.mubr.bf16.gmra.mrb[0].mxu0 %v543
  %v1158 = vpop.f32.mrb[0].mxu0
  %v1159 = vadd.f32 %v934, %v1158
  %v1160 = vpop.f32.mrb[0].mxu0
  %v1161 = vpop.f32.mrb[0].mxu0
  %v1162 = vadd.f32 %v937, %v1161
  %v1163 = vpop.f32.mrb[0].mxu0
  %1164 = vmatprep.mubr.bf16.mxu0 0
  %1165 = vmatmul.mubr.bf16.gmra.mrb[0].mxu0 %v546
  %v1166 = vpop.f32.mrb[0].mxu0
  %v1167 = vadd.f32 %v942, %v1166
  %v1168 = vpop.f32.mrb[0].mxu0
  %v1169 = vpop.f32.mrb[0].mxu0
  %v1170 = vadd.f32 %v945, %v1169
  %v1171 = vpop.f32.mrb[0].mxu0
  %1172 = vmatprep.mubr.bf16.mxu0 0
  %1173 = vmatmul.mubr.bf16.gmra.mrb[0].mxu0 %v549
  %v1174 = vpop.f32.mrb[0].mxu0
  %v1175 = vadd.f32 %v950, %v1174
  %v1176 = vpop.f32.mrb[0].mxu0
  %v1177 = vpop.f32.mrb[0].mxu0
  %v1178 = vadd.f32 %v953, %v1177
  %v1179 = vpop.f32.mrb[0].mxu0
  %1180 = vmatprep.mubr.bf16.mxu0 0
  %1181 = vmatmul.mubr.bf16.gmra.mrb[0].mxu0 %v552
  %v1182 = vpop.f32.mrb[0].mxu0
  %v1183 = vadd.f32 %v958, %v1182
  %v1184 = vpop.f32.mrb[0].mxu0
  %v1185 = vpop.f32.mrb[0].mxu0
  %v1186 = vadd.f32 %v961, %v1185
  %v1187 = vpop.f32.mrb[0].mxu0
  %1188 = vmatprep.mubr.bf16.mxu0 0
  %1189 = vmatmul.mubr.bf16.gmra.mrb[0].mxu0 %v555
  %v1190 = vpop.f32.mrb[0].mxu0
  %v1191 = vadd.f32 %v966, %v1190
  %v1192 = vpop.f32.mrb[0].mxu0
  %v1193 = vpop.f32.mrb[0].mxu0
  %v1194 = vadd.f32 %v969, %v1193
  %v1195 = vpop.f32.mrb[0].mxu0
  %1196 = vmatprep.mubr.bf16.mxu0 0
  %1197 = vmatmul.mubr.bf16.gmra.mrb[0].mxu0 %v558
  %v1198 = vpop.f32.mrb[0].mxu0
  %v1199 = vadd.f32 %v974, %v1198
  %v1200 = vpop.f32.mrb[0].mxu0
  %v1201 = vpop.f32.mrb[0].mxu0
  %v1202 = vadd.f32 %v977, %v1201
  %v1203 = vpop.f32.mrb[0].mxu0
  %1204 = vmatprep.mubr.bf16.mxu0 0
  %1205 = vmatmul.mubr.bf16.gmra.mrb[0].mxu0 %v561
  %v1206 = vpop.f32.mrb[0].mxu0
  %v1207 = vadd.f32 %v982, %v1206
  %v1208 = vpop.f32.mrb[0].mxu0
  %v1209 = vpop.f32.mrb[0].mxu0
  %v1210 = vadd.f32 %v985, %v1209
  %v1211 = vpop.f32.mrb[0].mxu0
  %1212 = vmatprep.mubr.bf16.mxu0 0
  %1213 = vmatmul.mubr.bf16.gmra.mrb[0].mxu0 %v564
  %v1214 = vpop.f32.mrb[0].mxu0
  %v1215 = vadd.f32 %v990, %v1214
  %v1216 = vpop.f32.mrb[0].mxu0
  %v1217 = vpop.f32.mrb[0].mxu0
  %v1218 = vadd.f32 %v993, %v1217
  %v1219 = vpop.f32.mrb[0].mxu0
  %1220 = vmatprep.mubr.bf16.mxu0 0
  %1221 = vmatmul.mubr.bf16.gmra.mrb[0].mxu0 %v567
  %v1222 = vpop.f32.mrb[0].mxu0
  %v1223 = vadd.f32 %v998, %v1222
  %v1224 = vpop.f32.mrb[0].mxu0
  %v1225 = vpop.f32.mrb[0].mxu0
  %v1226 = vadd.f32 %v1001, %v1225
  %v1227 = vpop.f32.mrb[0].mxu0
  %1228 = vmatprep.mubr.bf16.mxu0 0
  %1229 = vmatmul.mubr.bf16.gmra.mrb[0].mxu0 %v570
  %v1230 = vpop.f32.mrb[0].mxu0
  %v1231 = vadd.f32 %v1006, %v1230
  %v1232 = vpop.f32.mrb[0].mxu0
  %v1233 = vpop.f32.mrb[0].mxu0
  %v1234 = vadd.f32 %v1009, %v1233
  %v1235 = vpop.f32.mrb[0].mxu0
  %1236 = vdwg.mxu0
  %v1237 = vadd.f32 %v67, %v1047
  %v1238 = vadd.f32 %v68, %v1050
  %v1239 = vadd.f32 %v69, %v1055
  %v1240 = vadd.f32 %v70, %v1058
  %v1241 = vadd.f32 %v71, %v1063
  %v1242 = vadd.f32 %v72, %v1066
  %v1243 = vadd.f32 %v73, %v1071
  %v1244 = vadd.f32 %v74, %v1074
  %v1245 = vadd.f32 %v75, %v1079
  %v1246 = vadd.f32 %v76, %v1082
  %v1247 = vadd.f32 %v77, %v1087
  %v1248 = vadd.f32 %v78, %v1090
  %v1249 = vadd.f32 %v79, %v1095
  %v1250 = vadd.f32 %v80, %v1098
  %v1251 = vadd.f32 %v81, %v1103
  %v1252 = vadd.f32 %v82, %v1106
  %v1253 = vadd.f32 %v83, %v1111
  %v1254 = vadd.f32 %v84, %v1114
  %v1255 = vadd.f32 %v85, %v1119
  %v1256 = vadd.f32 %v86, %v1122
  %v1257 = vadd.f32 %v87, %v1127
  %v1258 = vadd.f32 %v88, %v1130
  %v1259 = vadd.f32 %v89, %v1135
  %v1260 = vadd.f32 %v90, %v1138
  %v1261 = vadd.f32 %v91, %v1143
  %v1262 = vadd.f32 %v92, %v1146
  %v1263 = vadd.f32 %v93, %v1151
  %v1264 = vadd.f32 %v94, %v1154
  %v1265 = vadd.f32 %v95, %v1159
  %v1266 = vadd.f32 %v96, %v1162
  %v1267 = vadd.f32 %v97, %v1167
  %v1268 = vadd.f32 %v98, %v1170
  %v1269 = vadd.f32 %v99, %v1175
  %v1270 = vadd.f32 %v100, %v1178
  %v1271 = vadd.f32 %v101, %v1183
  %v1272 = vadd.f32 %v102, %v1186
  %v1273 = vadd.f32 %v103, %v1191
  %v1274 = vadd.f32 %v104, %v1194
  %v1275 = vadd.f32 %v105, %v1199
  %v1276 = vadd.f32 %v106, %v1202
  %v1277 = vadd.f32 %v107, %v1207
  %v1278 = vadd.f32 %v108, %v1210
  %v1279 = vadd.f32 %v109, %v1215
  %v1280 = vadd.f32 %v110, %v1218
  %v1281 = vadd.f32 %v111, %v1223
  %v1282 = vadd.f32 %v112, %v1226
  %v1283 = vadd.f32 %v113, %v1231
  %v1284 = vadd.f32 %v114, %v1234
  %1285 = vst [vmem:[%s3] sm:$0xff] %v1237
  %1286 = vst [vmem:[%s3 + $0x8] sm:$0xff] %v1238
  %1287 = vst [vmem:[%s3 + $0x10] sm:$0xff] %v1239
  %1288 = vst [vmem:[%s3 + $0x18] sm:$0xff] %v1240
  %1289 = vst [vmem:[%s3 + $0x20] sm:$0xff] %v1241
  %1290 = vst [vmem:[%s3 + $0x28] sm:$0xff] %v1242
  %1291 = vst [vmem:[%s3 + $0x30] sm:$0xff] %v1243
  %1292 = vst [vmem:[%s3 + $0x38] sm:$0xff] %v1244
  %1293 = vst [vmem:[%s3 + $0x40] sm:$0xff] %v1245
  %1294 = vst [vmem:[%s3 + $0x48] sm:$0xff] %v1246
  %1295 = vst [vmem:[%s3 + $0x50] sm:$0xff] %v1247
  %1296 = vst [vmem:[%s3 + $0x58] sm:$0xff] %v1248
  %1297 = vst [vmem:[%s3 + $0x60] sm:$0xff] %v1249
  %1298 = vst [vmem:[%s3 + $0x68] sm:$0xff] %v1250
  %1299 = vst [vmem:[%s3 + $0x70] sm:$0xff] %v1251
  %1300 = vst [vmem:[%s3 + $0x78] sm:$0xff] %v1252
  %1301 = vst [vmem:[%s3 + $0x80] sm:$0xff] %v1253
  %1302 = vst [vmem:[%s3 + $0x88] sm:$0xff] %v1254
  %1303 = vst [vmem:[%s3 + $0x90] sm:$0xff] %v1255
  %1304 = vst [vmem:[%s3 + $0x98] sm:$0xff] %v1256
  %1305 = vst [vmem:[%s3 + $0xa0] sm:$0xff] %v1257
  %1306 = vst [vmem:[%s3 + $0xa8] sm:$0xff] %v1258
  %1307 = vst [vmem:[%s3 + $0xb0] sm:$0xff] %v1259
  %1308 = vst [vmem:[%s3 + $0xb8] sm:$0xff] %v1260
  %1309 = vst [vmem:[%s3 + $0xc0] sm:$0xff] %v1261
  %1310 = vst [vmem:[%s3 + $0xc8] sm:$0xff] %v1262
  %1311 = vst [vmem:[%s3 + $0xd0] sm:$0xff] %v1263
  %1312 = vst [vmem:[%s3 + $0xd8] sm:$0xff] %v1264
  %1313 = vst [vmem:[%s3 + $0xe0] sm:$0xff] %v1265
  %1314 = vst [vmem:[%s3 + $0xe8] sm:$0xff] %v1266
  %1315 = vst [vmem:[%s3 + $0xf0] sm:$0xff] %v1267
  %1316 = vst [vmem:[%s3 + $0xf8] sm:$0xff] %v1268
  %1317 = vst [vmem:[%s3 + $0x100] sm:$0xff] %v1269
  %1318 = vst [vmem:[%s3 + $0x108] sm:$0xff] %v1270
  %1319 = vst [vmem:[%s3 + $0x110] sm:$0xff] %v1271
  %1320 = vst [vmem:[%s3 + $0x118] sm:$0xff] %v1272
  %1321 = vst [vmem:[%s3 + $0x120] sm:$0xff] %v1273
  %1322 = vst [vmem:[%s3 + $0x128] sm:$0xff] %v1274
  %1323 = vst [vmem:[%s3 + $0x130] sm:$0xff] %v1275
  %1324 = vst [vmem:[%s3 + $0x138] sm:$0xff] %v1276
  %1325 = vst [vmem:[%s3 + $0x140] sm:$0xff] %v1277
  %1326 = vst [vmem:[%s3 + $0x148] sm:$0xff] %v1278
  %1327 = vst [vmem:[%s3 + $0x150] sm:$0xff] %v1279
  %1328 = vst [vmem:[%s3 + $0x158] sm:$0xff] %v1280
  %1329 = vst [vmem:[%s3 + $0x160] sm:$0xff] %v1281
  %1330 = vst [vmem:[%s3 + $0x168] sm:$0xff] %v1282
  %1331 = vst [vmem:[%s3 + $0x170] sm:$0xff] %v1283
  %1332 = vst [vmem:[%s3 + $0x178] sm:$0xff] %v1284
  // Predicated region
  $region18: #{graph_convolution.3} parent=0 // pred_check
    %p1333 = pneg %p15
  $region19: #{graph_convolution.3} parent=0 // pred_check_branch
    %1335 = sbr.rel (%p1333) target = $region21
  $region20: #{graph_convolution.3} parent=0 // pred_region
    %v1336 = vld [vmem:[%s3] sm:$0xff]
    %v1337 = vld [vmem:[%s3 + $0x8] sm:$0xff]
    %v1338 = vld [vmem:[%s3 + $0x10] sm:$0xff]
    %v1339 = vld [vmem:[%s3 + $0x18] sm:$0xff]
    %v1340 = vld [vmem:[%s3 + $0x20] sm:$0xff]
    %v1341 = vld [vmem:[%s3 + $0x28] sm:$0xff]
    %v1342 = vld [vmem:[%s3 + $0x30] sm:$0xff]
    %v1343 = vld [vmem:[%s3 + $0x38] sm:$0xff]
    %v1344 = vld [vmem:[%s3 + $0x40] sm:$0xff]
    %v1345 = vld [vmem:[%s3 + $0x48] sm:$0xff]
    %v1346 = vld [vmem:[%s3 + $0x50] sm:$0xff]
    %v1347 = vld [vmem:[%s3 + $0x58] sm:$0xff]
    %v1348 = vld [vmem:[%s3 + $0x60] sm:$0xff]
    %v1349 = vld [vmem:[%s3 + $0x68] sm:$0xff]
    %v1350 = vld [vmem:[%s3 + $0x70] sm:$0xff]
    %v1351 = vld [vmem:[%s3 + $0x78] sm:$0xff]
    %v1352 = vld [vmem:[%s3 + $0x80] sm:$0xff]
    %v1353 = vld [vmem:[%s3 + $0x88] sm:$0xff]
    %v1354 = vld [vmem:[%s3 + $0x90] sm:$0xff]
    %v1355 = vld [vmem:[%s3 + $0x98] sm:$0xff]
    %v1356 = vld [vmem:[%s3 + $0xa0] sm:$0xff]
    %v1357 = vld [vmem:[%s3 + $0xa8] sm:$0xff]
    %v1358 = vld [vmem:[%s3 + $0xb0] sm:$0xff]
    %v1359 = vld [vmem:[%s3 + $0xb8] sm:$0xff]
    %v1360 = vld [vmem:[%s3 + $0xc0] sm:$0xff]
    %v1361 = vld [vmem:[%s3 + $0xc8] sm:$0xff]
    %v1362 = vld [vmem:[%s3 + $0xd0] sm:$0xff]
    %v1363 = vld [vmem:[%s3 + $0xd8] sm:$0xff]
    %v1364 = vld [vmem:[%s3 + $0xe0] sm:$0xff]
    %v1365 = vld [vmem:[%s3 + $0xe8] sm:$0xff]
    %v1366 = vld [vmem:[%s3 + $0xf0] sm:$0xff]
    %v1367 = vld [vmem:[%s3 + $0xf8] sm:$0xff]
    %v1368 = vld [vmem:[%s3 + $0x100] sm:$0xff]
    %v1369 = vld [vmem:[%s3 + $0x108] sm:$0xff]
    %v1370 = vld [vmem:[%s3 + $0x110] sm:$0xff]
    %v1371 = vld [vmem:[%s3 + $0x118] sm:$0xff]
    %v1372 = vld [vmem:[%s3 + $0x120] sm:$0xff]
    %v1373 = vld [vmem:[%s3 + $0x128] sm:$0xff]
    %v1374 = vld [vmem:[%s3 + $0x130] sm:$0xff]
    %v1375 = vld [vmem:[%s3 + $0x138] sm:$0xff]
    %v1376 = vld [vmem:[%s3 + $0x140] sm:$0xff]
    %v1377 = vld [vmem:[%s3 + $0x148] sm:$0xff]
    %v1378 = vld [vmem:[%s3 + $0x150] sm:$0xff]
    %v1379 = vld [vmem:[%s3 + $0x158] sm:$0xff]
    %v1380 = vld [vmem:[%s3 + $0x160] sm:$0xff]
    %v1381 = vld [vmem:[%s3 + $0x168] sm:$0xff]
    %v1382 = vld [vmem:[%s3 + $0x170] sm:$0xff]
    %v1383 = vld [vmem:[%s3 + $0x178] sm:$0xff]
    %v1384 = vld [vmem:[%s2] sm:$0x1]
    %v1386 = vlaneseq
    %v1387 = vshrl.u32 %v1386, 7
    %v1388 = vsub.s32 0, %v1387
    %v1389 = vrot.slane %v1384, %v1388
    %v1391 = vadd.f32 %v1336, %v1389
    %v1392 = vadd.f32 %v1337, %v1389
    %v1393 = vadd.f32 %v1338, %v1389
    %v1394 = vadd.f32 %v1339, %v1389
    %v1395 = vadd.f32 %v1340, %v1389
    %v1396 = vadd.f32 %v1341, %v1389
    %v1397 = vadd.f32 %v1342, %v1389
    %v1398 = vadd.f32 %v1343, %v1389
    %v1399 = vadd.f32 %v1344, %v1389
    %v1400 = vadd.f32 %v1345, %v1389
    %v1401 = vadd.f32 %v1346, %v1389
    %v1402 = vadd.f32 %v1347, %v1389
    %v1403 = vadd.f32 %v1348, %v1389
    %v1404 = vadd.f32 %v1349, %v1389
    %v1405 = vadd.f32 %v1350, %v1389
    %v1406 = vadd.f32 %v1351, %v1389
    %v1407 = vadd.f32 %v1352, %v1389
    %v1408 = vadd.f32 %v1353, %v1389
    %v1409 = vadd.f32 %v1354, %v1389
    %v1410 = vadd.f32 %v1355, %v1389
    %v1411 = vadd.f32 %v1356, %v1389
    %v1412 = vadd.f32 %v1357, %v1389
    %v1413 = vadd.f32 %v1358, %v1389
    %v1414 = vadd.f32 %v1359, %v1389
    %v1415 = vadd.f32 %v1360, %v1389
    %v1416 = vadd.f32 %v1361, %v1389
    %v1417 = vadd.f32 %v1362, %v1389
    %v1418 = vadd.f32 %v1363, %v1389
    %v1419 = vadd.f32 %v1364, %v1389
    %v1420 = vadd.f32 %v1365, %v1389
    %v1421 = vadd.f32 %v1366, %v1389
    %v1422 = vadd.f32 %v1367, %v1389
    %v1423 = vadd.f32 %v1368, %v1389
    %v1424 = vadd.f32 %v1369, %v1389
    %v1425 = vadd.f32 %v1370, %v1389
    %v1426 = vadd.f32 %v1371, %v1389
    %v1427 = vadd.f32 %v1372, %v1389
    %v1428 = vadd.f32 %v1373, %v1389
    %v1429 = vadd.f32 %v1374, %v1389
    %v1430 = vadd.f32 %v1375, %v1389
    %v1431 = vadd.f32 %v1376, %v1389
    %v1432 = vadd.f32 %v1377, %v1389
    %v1433 = vadd.f32 %v1378, %v1389
    %v1434 = vadd.f32 %v1379, %v1389
    %v1435 = vadd.f32 %v1380, %v1389
    %v1436 = vadd.f32 %v1381, %v1389
    %v1437 = vadd.f32 %v1382, %v1389
    %v1438 = vadd.f32 %v1383, %v1389
    %1439 = vst [vmem:[%s3] sm:$0xff] %v1391
    %1440 = vst [vmem:[%s3 + $0x8] sm:$0xff] %v1392
    %1441 = vst [vmem:[%s3 + $0x10] sm:$0xff] %v1393
    %1442 = vst [vmem:[%s3 + $0x18] sm:$0xff] %v1394
    %1443 = vst [vmem:[%s3 + $0x20] sm:$0xff] %v1395
    %1444 = vst [vmem:[%s3 + $0x28] sm:$0xff] %v1396
    %1445 = vst [vmem:[%s3 + $0x30] sm:$0xff] %v1397
    %1446 = vst [vmem:[%s3 + $0x38] sm:$0xff] %v1398
    %1447 = vst [vmem:[%s3 + $0x40] sm:$0xff] %v1399
    %1448 = vst [vmem:[%s3 + $0x48] sm:$0xff] %v1400
    %1449 = vst [vmem:[%s3 + $0x50] sm:$0xff] %v1401
    %1450 = vst [vmem:[%s3 + $0x58] sm:$0xff] %v1402
    %1451 = vst [vmem:[%s3 + $0x60] sm:$0xff] %v1403
    %1452 = vst [vmem:[%s3 + $0x68] sm:$0xff] %v1404
    %1453 = vst [vmem:[%s3 + $0x70] sm:$0xff] %v1405
    %1454 = vst [vmem:[%s3 + $0x78] sm:$0xff] %v1406
    %1455 = vst [vmem:[%s3 + $0x80] sm:$0xff] %v1407
    %1456 = vst [vmem:[%s3 + $0x88] sm:$0xff] %v1408
    %1457 = vst [vmem:[%s3 + $0x90] sm:$0xff] %v1409
    %1458 = vst [vmem:[%s3 + $0x98] sm:$0xff] %v1410
    %1459 = vst [vmem:[%s3 + $0xa0] sm:$0xff] %v1411
    %1460 = vst [vmem:[%s3 + $0xa8] sm:$0xff] %v1412
    %1461 = vst [vmem:[%s3 + $0xb0] sm:$0xff] %v1413
    %1462 = vst [vmem:[%s3 + $0xb8] sm:$0xff] %v1414
    %1463 = vst [vmem:[%s3 + $0xc0] sm:$0xff] %v1415
    %1464 = vst [vmem:[%s3 + $0xc8] sm:$0xff] %v1416
    %1465 = vst [vmem:[%s3 + $0xd0] sm:$0xff] %v1417
    %1466 = vst [vmem:[%s3 + $0xd8] sm:$0xff] %v1418
    %1467 = vst [vmem:[%s3 + $0xe0] sm:$0xff] %v1419
    %1468 = vst [vmem:[%s3 + $0xe8] sm:$0xff] %v1420
    %1469 = vst [vmem:[%s3 + $0xf0] sm:$0xff] %v1421
    %1470 = vst [vmem:[%s3 + $0xf8] sm:$0xff] %v1422
    %1471 = vst [vmem:[%s3 + $0x100] sm:$0xff] %v1423
    %1472 = vst [vmem:[%s3 + $0x108] sm:$0xff] %v1424
    %1473 = vst [vmem:[%s3 + $0x110] sm:$0xff] %v1425
    %1474 = vst [vmem:[%s3 + $0x118] sm:$0xff] %v1426
    %1475 = vst [vmem:[%s3 + $0x120] sm:$0xff] %v1427
    %1476 = vst [vmem:[%s3 + $0x128] sm:$0xff] %v1428
    %1477 = vst [vmem:[%s3 + $0x130] sm:$0xff] %v1429
    %1478 = vst [vmem:[%s3 + $0x138] sm:$0xff] %v1430
    %1479 = vst [vmem:[%s3 + $0x140] sm:$0xff] %v1431
    %1480 = vst [vmem:[%s3 + $0x148] sm:$0xff] %v1432
    %1481 = vst [vmem:[%s3 + $0x150] sm:$0xff] %v1433
    %1482 = vst [vmem:[%s3 + $0x158] sm:$0xff] %v1434
    %1483 = vst [vmem:[%s3 + $0x160] sm:$0xff] %v1435
    %1484 = vst [vmem:[%s3 + $0x168] sm:$0xff] %v1436
    %1485 = vst [vmem:[%s3 + $0x170] sm:$0xff] %v1437
    %1486 = vst [vmem:[%s3 + $0x178] sm:$0xff] %v1438
  $region21: #{graph_convolution.3} parent=0 // pred_fallthru
    _
  // Predicated region
  $region22: #{graph_convolution.3} parent=0 // pred_check
    _
  $region23: #{graph_convolution.3} parent=0 // pred_check_branch
    %1488 = sbr.rel (0) target = $region25
  $region24: #{graph_convolution.3} parent=0 // pred_region
    _
  $region25: #{graph_convolution.3} parent=0 // pred_fallthru
    _
  // Predicated region
  $region26: #{graph_convolution.3} parent=0 // pred_check
    _
  $region27: #{graph_convolution.3} parent=0 // pred_check_branch
    %1490 = sbr.rel (0) target = $region29
  $region28: #{graph_convolution.3} parent=0 // pred_region
    _
  $region29: #{graph_convolution.3} parent=0 // pred_fallthru
    _

</llo_original>
